<compile_context>
chip_gen: v5e
topology: v5e:2x2
jax: 0.10.0
libtpu: 0.0.40
codegen_flags: <defaults>
</compile_context>

<pallas_src>
import math

import jax
import jax.numpy as jnp
from jax.experimental import pallas as pl
from jax.experimental.pallas import tpu as pltpu


# Rows of the packed f32 bias / LayerNorm slab (lane-padded to max(2H, F)).
R_EMBG, R_EMBB = 0, 1          # embedding LayerNorm gamma / beta      [H]
R_BKV = 2                      # fused K|V projection bias             [2H]
R_BQ, R_BO = 3, 4              # query / attention-output biases       [H]
R_LN1G, R_LN1B = 5, 6          # post-attention LayerNorm              [H]
R_B1, R_B2 = 7, 8              # FFN up / down biases                  [F] / [H]
R_LN2G, R_LN2B = 9, 10         # post-FFN LayerNorm                    [H]
R_BP, R_BH = 11, 12            # pooler bias / stacked-head bias       [H] / [HEAD_PAD]
N_BIAS_ROWS = 16               # padded to a full sublane tile
HEAD_PAD = 128                 # 3x Linear(H,1) heads, lane-padded to one vreg width


def _layer_norm(x, gamma, beta, eps=1e-12):
    mu = jnp.mean(x, axis=-1, keepdims=True)
    var = jnp.mean((x - mu) ** 2, axis=-1, keepdims=True)
    return (x - mu) * jax.lax.rsqrt(var + eps) * gamma + beta


# ----------------------------- Pallas kernel ------------------------------ #
def bert_cls_kernel(x_ref, mask_ref, wslab_ref, w2_ref, bias_ref, o_ref):
    """One grid step == TB examples.  K/V cover all S positions; the query /
    FFN / LayerNorm / pooler / head chain runs on the TB stacked CLS rows."""
    TB, S, H = x_ref.shape
    F = w2_ref.shape[0]
    f32, bf16 = jnp.float32, jnp.bfloat16
    inv_sqrt_h = 1.0 / math.sqrt(H)

    # Static column offsets into the packed bf16 weight slab
    # [ K | V | Q | O | FFN-up | pooler | heads ]; all multiples of 128.
    O_KV, O_Q, O_O, O_1 = 0, 2 * H, 3 * H, 4 * H
    O_P, O_H = 4 * H + F, 5 * H + F

    def w(col, width):                       # tile-aligned lane slice of the weight slab
        return wslab_ref[:, col:col + width]

    def b(row, width):                       # one row of the bias / LN slab
        return bias_ref[row:row + 1, :width]

    # ---- embedding LayerNorm (bf16 stream in, f32 math) --------------------
    x = _layer_norm(x_ref[...].astype(f32), b(R_EMBG, H), b(R_EMBB, H))    # [TB,S,H]
    x_cls = x[:, 0, :]                                                     # [TB,H] stacked CLS rows

    # ---- fused K/V projection for all TB*S positions (one MXU matmul) ------
    kv = jnp.dot(x.astype(bf16).reshape(TB * S, H), w(O_KV, 2 * H),
                 preferred_element_type=f32) + b(R_BKV, 2 * H)             # [TB*S,2H]
    kv = kv.reshape(TB, S, 2 * H)
    k, v = kv[:, :, :H], kv[:, :, H:]                                      # tile-aligned splits

    # ---- query projection for the CLS rows only -----------------------------
    q = jnp.dot(x_cls.astype(bf16), w(O_Q, H),
                preferred_element_type=f32) + b(R_BQ, H)                   # [TB,H]

    # ---- single-head attention, CLS query over all keys (per example) ------
    # M=1 per example, so keep it on the VPU (mult + lane reduce): no per-
    # example MXU pass and no K transpose (vxpose) per the review.
    scores = jnp.sum(q[:, None, :] * k, axis=-1) * inv_sqrt_h              # [TB,S]
    # NOTE: an all-zero mask row degenerates to a uniform distribution (no NaN).
    scores = scores + (mask_ref[...] - 1.0) * 1e9
    scores = scores - jnp.max(scores, axis=-1, keepdims=True)
    p = jnp.exp(scores)                                                    # f32 (v5e: no bf16 EUP)
    attn = p / jnp.sum(p, axis=-1, keepdims=True)                          # exact softmax
    ctx = jnp.sum(attn[:, :, None] * v, axis=1)                            # [TB,H]

    ctx = jnp.dot(ctx.astype(bf16), w(O_O, H),
                  preferred_element_type=f32) + b(R_BO, H)                 # [TB,H]
    h1 = _layer_norm(x_cls + ctx, b(R_LN1G, H), b(R_LN1B, H))              # [TB,H]

    # ---- feed forward on the stacked CLS rows --------------------------------
    ff = jnp.dot(h1.astype(bf16), w(O_1, F),
                 preferred_element_type=f32) + b(R_B1, F)                  # [TB,F]
    # TODO(synk): HF BERT default is exact erf GELU; tanh approximation used here.
    ff = jax.nn.gelu(ff, approximate=True)
    ff = jnp.dot(ff.astype(bf16), w2_ref[...],
                 preferred_element_type=f32) + b(R_B2, H)                  # [TB,H]
    h2 = _layer_norm(h1 + ff, b(R_LN2G, H), b(R_LN2B, H))                  # [TB,H]

    # ---- pooler: tanh(dense(hidden[:, 0])) -----------------------------------
    pooled = jnp.tanh(jnp.dot(h2.astype(bf16), w(O_P, H),
                              preferred_element_type=f32) + b(R_BP, H))    # [TB,H]

    # Dropout(p=0.3): inference-mode identity.
    # TODO(synk): train-mode dropout would use pltpu.prng_seed + prng_random_bits.

    # ---- taste / quantity / delivery heads + sigmoid, lane-dense store -------
    logits = jnp.dot(pooled.astype(bf16), w(O_H, HEAD_PAD),
                     preferred_element_type=f32) + b(R_BH, HEAD_PAD)       # [TB,128]
    o_ref[...] = jax.nn.sigmoid(logits)


# ------------------------------ parameters --------------------------------- #
def make_params(key, vocab=100, max_s=16, H=128, F=512):
    """Synthesized single-layer BERT backbone + heads, packed for the kernel."""
    ks = jax.random.split(key, 16)
    n = lambda k, shape: (0.02 * jax.random.normal(k, shape)).astype(jnp.float32)

    wk, wv, wq = n(ks[3], (H, H)), n(ks[4], (H, H)), n(ks[5], (H, H))
    wo, w1, w2 = n(ks[6], (H, H)), n(ks[7], (H, F)), n(ks[8], (F, H))
    wp = n(ks[9], (H, H))
    heads = jnp.concatenate(                            # taste | quantity | delivery
        [n(ks[10], (H, 1)), n(ks[11], (H, 1)), n(ks[12], (H, 1))], axis=1)
    heads = jnp.zeros((H, HEAD_PAD), jnp.float32).at[:, :3].set(heads)

    # One resident bf16 weight slab [H, 5H + F + HEAD_PAD]: K|V|Q|O|FFN-up|pooler|heads.
    w_slab = jnp.concatenate([wk, wv, wq, wo, w1, wp, heads], axis=1).astype(jnp.bfloat16)

    # One resident f32 bias / LayerNorm slab, rows zero-padded to max(2H, F, HEAD_PAD).
    BW = max(2 * H, F, HEAD_PAD)
    bias = jnp.zeros((N_BIAS_ROWS, BW), jnp.float32)
    bias = bias.at[R_EMBG, :H].set(1.0)
    bias = bias.at[R_LN1G, :H].set(1.0)
    bias = bias.at[R_LN2G, :H].set(1.0)
    bias = bias.at[R_BKV, :2 * H].set(n(ks[13], (2 * H,)))
    bias = bias.at[R_B1, :F].set(n(ks[14], (F,)))
    bias = bias.at[R_BP, :H].set(n(ks[15], (H,)))

    return dict(tok_emb=n(ks[0], (vocab, H)), seg_emb=n(ks[1], (2, H)),
                pos_emb=n(ks[2], (max_s, H)),
                w_slab=w_slab, w2=w2.astype(jnp.bfloat16), bias=bias)


# ------------------------------ forward wrapper ----------------------------- #
def bert_classifier_forward(input_ids, attention_mask, token_type_ids, params, *, block_b=8):
    B, S = input_ids.shape
    H = params['tok_emb'].shape[1]

    # Embedding glue: table gathers only (LayerNorm is fused into the kernel);
    # the summed embeddings are streamed to the kernel in bf16 (half DMA bytes).
    # TODO(synk): gathers could move in-kernel via PrefetchScalarGridSpec-prefetched
    # ids + pl.Element row gathers to avoid the HBM round trip of [B,S,H].
    x = (params['tok_emb'][input_ids]
         + params['seg_emb'][token_type_ids]
         + params['pos_emb'][None, :S, :]).astype(jnp.bfloat16)            # [B,S,H]
    mask = attention_mask.astype(jnp.float32)                              # [B,S]

    TB = min(block_b, B)                         # 8 CLS rows / step -> full sublanes
    Bp = pl.cdiv(B, TB) * TB
    if Bp != B:
        x = jnp.pad(x, ((0, Bp - B), (0, 0), (0, 0)))
        mask = jnp.pad(mask, ((0, Bp - B), (0, 0)), constant_values=1.0)

    w_slab, w2, bias = params['w_slab'], params['w2'], params['bias']
    const = lambda a: pl.BlockSpec(a.shape, lambda i: (0, 0))   # resident: block index never changes

    out = pl.pallas_call(
        bert_cls_kernel,
        out_shape=jax.ShapeDtypeStruct((Bp, HEAD_PAD), jnp.float32),
        grid=(Bp // TB,),                                         # >=2 steps -> both v7x TCs
        in_specs=[pl.BlockSpec((TB, S, H), lambda i: (i, 0, 0)),  # streamed embeddings (bf16)
                  pl.BlockSpec((TB, S), lambda i: (i, 0)),        # streamed mask
                  const(w_slab), const(w2), const(bias)],         # resident weight/bias slabs
        out_specs=pl.BlockSpec((TB, HEAD_PAD), lambda i: (i, 0)),
        compiler_params=pltpu.CompilerParams(
            dimension_semantics=("parallel",),
            vmem_limit_bytes=48 * 1024 * 1024),                   # headroom vs v7x 64 MiB VMEM
    )(x, mask, w_slab, w2, bias)

    logits = out[:B, :3]                                           # [B,3]
    return logits[:, 0:1], logits[:, 1:2], logits[:, 2:3]


if __name__ == "__main__":
    B, S, H, F, VOCAB = 16, 16, 128, 512, 100
    key = jax.random.PRNGKey(0)
    k_param, k_ids = jax.random.split(key, 2)

    params = make_params(k_param, vocab=VOCAB, max_s=S, H=H, F=F)

    input_ids = jax.random.randint(k_ids, (B, S), 0, VOCAB, dtype=jnp.int32)
    attention_mask = jnp.ones((B, S), dtype=jnp.int32).at[:, S - 3:].set(0)   # 3 pad positions
    token_type_ids = jnp.zeros((B, S), dtype=jnp.int32)

    taste, quantity, delivery = bert_classifier_forward(
        input_ids, attention_mask, token_type_ids, params, block_b=8)
    jax.block_until_ready((taste, quantity, delivery))

    assert taste.shape == (B, 1) and quantity.shape == (B, 1) and delivery.shape == (B, 1)
    for head_out in (taste, quantity, delivery):
        assert bool(jnp.all(jnp.isfinite(head_out)))
        assert bool(jnp.all((head_out >= 0) & (head_out <= 1)))
    print("KERNEL_OK")
</pallas_src>

<mosaic_0001>
module attributes {stable_mosaic.version = 11 : i64} {
  func.func @bert_cls_kernel(%arg0: i32, %arg1: memref<8x16x128xbf16, #tpu.memory_space<vmem>>, %arg2: memref<8x16xf32, #tpu.memory_space<vmem>>, %arg3: memref<128x1280xbf16, #tpu.memory_space<vmem>>, %arg4: memref<512x128xbf16, #tpu.memory_space<vmem>>, %arg5: memref<16x512xf32, #tpu.memory_space<vmem>>, %arg6: memref<8x128xf32, #tpu.memory_space<vmem>>) attributes {dimension_semantics = [#tpu.dimension_semantics<parallel>], iteration_bounds = array<i64: 2>, scalar_prefetch = 0 : i64, scratch_operands = 0 : i64, tpu.core_type = #tpu.core_type<tc>, window_params = [{transform_indices = @transform_0, window_bounds = array<i64: 8, 16, 128>}, {transform_indices = @transform_1, window_bounds = array<i64: 8, 16>}, {pipeline_mode = #tpu.pipeline_mode<synchronous>, transform_indices = @transform_2, window_bounds = array<i64: 128, 1280>}, {pipeline_mode = #tpu.pipeline_mode<synchronous>, transform_indices = @transform_3, window_bounds = array<i64: 512, 128>}, {pipeline_mode = #tpu.pipeline_mode<synchronous>, transform_indices = @transform_4, window_bounds = array<i64: 16, 512>}, {transform_indices = @transform_5, window_bounds = array<i64: 8, 128>}]} {
    %c0 = arith.constant 0 : index
    %c0_0 = arith.constant 0 : index
    %c0_1 = arith.constant 0 : index
    %0 = vector.load %arg1[%c0, %c0_0, %c0_1] : memref<8x16x128xbf16, #tpu.memory_space<vmem>>, vector<8x16x128xbf16>
    %1 = arith.extf %0 : vector<8x16x128xbf16> to vector<8x16x128xf32>
    %c0_2 = arith.constant 0 : index
    %c0_3 = arith.constant 0 : index
    %2 = vector.load %arg5[%c0_2, %c0_3] : memref<16x512xf32, #tpu.memory_space<vmem>>, vector<1x128xf32>
    %c1 = arith.constant 1 : index
    %c0_4 = arith.constant 0 : index
    %3 = vector.load %arg5[%c1, %c0_4] : memref<16x512xf32, #tpu.memory_space<vmem>>, vector<1x128xf32>
    %cst = arith.constant dense<0.000000e+00> : vector<8x16xf32>
    %4 = vector.multi_reduction <add>, %1, %cst [2] : vector<8x16x128xf32> to vector<8x16xf32>
    %5 = vector.shape_cast %4 : vector<8x16xf32> to vector<8x16x1xf32>
    %cst_5 = arith.constant 1.280000e+02 : f32
    %6 = vector.broadcast %cst_5 : f32 to vector<8x16x1xf32>
    %7 = arith.divf %5, %6 : vector<8x16x1xf32>
    %8 = vector.broadcast %7 : vector<8x16x1xf32> to vector<8x16x128xf32>
    %9 = arith.subf %1, %8 : vector<8x16x128xf32>
    %10 = arith.mulf %9, %9 : vector<8x16x128xf32>
    %cst_6 = arith.constant dense<0.000000e+00> : vector<8x16xf32>
    %11 = vector.multi_reduction <add>, %10, %cst_6 [2] : vector<8x16x128xf32> to vector<8x16xf32>
    %12 = vector.shape_cast %11 : vector<8x16xf32> to vector<8x16x1xf32>
    %cst_7 = arith.constant 1.280000e+02 : f32
    %13 = vector.broadcast %cst_7 : f32 to vector<8x16x1xf32>
    %14 = arith.divf %12, %13 : vector<8x16x1xf32>
    %15 = vector.broadcast %7 : vector<8x16x1xf32> to vector<8x16x128xf32>
    %16 = arith.subf %1, %15 : vector<8x16x128xf32>
    %cst_8 = arith.constant 9.99999996E-13 : f32
    %17 = vector.broadcast %cst_8 : f32 to vector<8x16x1xf32>
    %18 = arith.addf %14, %17 : vector<8x16x1xf32>
    %19 = math.rsqrt %18 : vector<8x16x1xf32>
    %20 = vector.broadcast %19 : vector<8x16x1xf32> to vector<8x16x128xf32>
    %21 = arith.mulf %16, %20 : vector<8x16x128xf32>
    %22 = vector.shape_cast %2 : vector<1x128xf32> to vector<1x1x128xf32>
    %23 = vector.broadcast %22 : vector<1x1x128xf32> to vector<8x16x128xf32>
    %24 = arith.mulf %21, %23 : vector<8x16x128xf32>
    %25 = vector.shape_cast %3 : vector<1x128xf32> to vector<1x1x128xf32>
    %26 = vector.broadcast %25 : vector<1x1x128xf32> to vector<8x16x128xf32>
    %27 = arith.addf %24, %26 : vector<8x16x128xf32>
    %28 = vector.extract_strided_slice %27 {offsets = [0, 0, 0], sizes = [8, 1, 128], strides = [1, 1, 1]} : vector<8x16x128xf32> to vector<8x1x128xf32>
    %29 = vector.shape_cast %28 : vector<8x1x128xf32> to vector<8x128xf32>
    %30 = arith.truncf %27 : vector<8x16x128xf32> to vector<8x16x128xbf16>
    %31 = vector.shape_cast %30 : vector<8x16x128xbf16> to vector<128x128xbf16>
    %c0_9 = arith.constant 0 : index
    %c0_10 = arith.constant 0 : index
    %32 = vector.load %arg3[%c0_9, %c0_10] : memref<128x1280xbf16, #tpu.memory_space<vmem>>, vector<128x256xbf16>
    %cst_11 = arith.constant dense<0.000000e+00> : vector<128x256xf32>
    %33 = tpu.matmul %31, %32, %cst_11 {dimension_numbers = #tpu.dot_dimension_numbers<[1], [0], [0], [1], [0, 0, 1, 1], [], []>} : vector<128x128xbf16>, vector<128x256xbf16>, vector<128x256xf32> -> vector<128x256xf32>
    %c2 = arith.constant 2 : index
    %c0_12 = arith.constant 0 : index
    %34 = vector.load %arg5[%c2, %c0_12] : memref<16x512xf32, #tpu.memory_space<vmem>>, vector<1x256xf32>
    %35 = vector.broadcast %34 : vector<1x256xf32> to vector<128x256xf32>
    %36 = arith.addf %33, %35 : vector<128x256xf32>
    %37 = vector.shape_cast %36 : vector<128x256xf32> to vector<8x16x256xf32>
    %38 = vector.extract_strided_slice %37 {offsets = [0, 0, 0], sizes = [8, 16, 128], strides = [1, 1, 1]} : vector<8x16x256xf32> to vector<8x16x128xf32>
    %39 = vector.extract_strided_slice %37 {offsets = [0, 0, 128], sizes = [8, 16, 128], strides = [1, 1, 1]} : vector<8x16x256xf32> to vector<8x16x128xf32>
    %40 = arith.truncf %29 : vector<8x128xf32> to vector<8x128xbf16>
    %c0_13 = arith.constant 0 : index
    %c256 = arith.constant 256 : index
    %41 = vector.load %arg3[%c0_13, %c256] : memref<128x1280xbf16, #tpu.memory_space<vmem>>, vector<128x128xbf16>
    %cst_14 = arith.constant dense<0.000000e+00> : vector<8x128xf32>
    %42 = tpu.matmul %40, %41, %cst_14 {dimension_numbers = #tpu.dot_dimension_numbers<[1], [0], [0], [1], [0, 0, 1, 1], [], []>} : vector<8x128xbf16>, vector<128x128xbf16>, vector<8x128xf32> -> vector<8x128xf32>
    %c3 = arith.constant 3 : index
    %c0_15 = arith.constant 0 : index
    %43 = vector.load %arg5[%c3, %c0_15] : memref<16x512xf32, #tpu.memory_space<vmem>>, vector<1x128xf32>
    %44 = vector.broadcast %43 : vector<1x128xf32> to vector<8x128xf32>
    %45 = arith.addf %42, %44 : vector<8x128xf32>
    %46 = vector.shape_cast %45 : vector<8x128xf32> to vector<8x1x128xf32>
    %47 = vector.broadcast %46 : vector<8x1x128xf32> to vector<8x16x128xf32>
    %48 = arith.mulf %47, %38 : vector<8x16x128xf32>
    %cst_16 = arith.constant dense<0.000000e+00> : vector<8x16xf32>
    %49 = vector.multi_reduction <add>, %48, %cst_16 [2] : vector<8x16x128xf32> to vector<8x16xf32>
    %cst_17 = arith.constant 0.0883883461 : f32
    %50 = vector.broadcast %cst_17 : f32 to vector<8x16xf32>
    %51 = arith.mulf %49, %50 : vector<8x16xf32>
    %c0_18 = arith.constant 0 : index
    %c0_19 = arith.constant 0 : index
    %52 = vector.load %arg2[%c0_18, %c0_19] : memref<8x16xf32, #tpu.memory_space<vmem>>, vector<8x16xf32>
    %cst_20 = arith.constant 1.000000e+00 : f32
    %53 = vector.broadcast %cst_20 : f32 to vector<8x16xf32>
    %54 = arith.subf %52, %53 : vector<8x16xf32>
    %cst_21 = arith.constant 1.000000e+09 : f32
    %55 = vector.broadcast %cst_21 : f32 to vector<8x16xf32>
    %56 = arith.mulf %54, %55 : vector<8x16xf32>
    %57 = arith.addf %51, %56 : vector<8x16xf32>
    %cst_22 = arith.constant dense<0xFF800000> : vector<8xf32>
    %58 = vector.multi_reduction <maximumf>, %57, %cst_22 [1] : vector<8x16xf32> to vector<8xf32>
    %59 = vector.shape_cast %58 : vector<8xf32> to vector<8x1xf32>
    %60 = vector.broadcast %59 : vector<8x1xf32> to vector<8x16xf32>
    %61 = arith.subf %57, %60 : vector<8x16xf32>
    %62 = math.exp %61 : vector<8x16xf32>
    %cst_23 = arith.constant dense<0.000000e+00> : vector<8xf32>
    %63 = vector.multi_reduction <add>, %62, %cst_23 [1] : vector<8x16xf32> to vector<8xf32>
    %64 = vector.shape_cast %63 : vector<8xf32> to vector<8x1xf32>
    %65 = vector.broadcast %64 : vector<8x1xf32> to vector<8x16xf32>
    %66 = arith.divf %62, %65 : vector<8x16xf32>
    %67 = vector.shape_cast %66 : vector<8x16xf32> to vector<8x16x1xf32>
    %68 = vector.broadcast %67 : vector<8x16x1xf32> to vector<8x16x128xf32>
    %69 = arith.mulf %68, %39 : vector<8x16x128xf32>
    %cst_24 = arith.constant dense<0.000000e+00> : vector<8x128xf32>
    %70 = vector.multi_reduction <add>, %69, %cst_24 [1] : vector<8x16x128xf32> to vector<8x128xf32>
    %71 = arith.truncf %70 : vector<8x128xf32> to vector<8x128xbf16>
    %c0_25 = arith.constant 0 : index
    %c384 = arith.constant 384 : index
    %72 = vector.load %arg3[%c0_25, %c384] : memref<128x1280xbf16, #tpu.memory_space<vmem>>, vector<128x128xbf16>
    %cst_26 = arith.constant dense<0.000000e+00> : vector<8x128xf32>
    %73 = tpu.matmul %71, %72, %cst_26 {dimension_numbers = #tpu.dot_dimension_numbers<[1], [0], [0], [1], [0, 0, 1, 1], [], []>} : vector<8x128xbf16>, vector<128x128xbf16>, vector<8x128xf32> -> vector<8x128xf32>
    %c4 = arith.constant 4 : index
    %c0_27 = arith.constant 0 : index
    %74 = vector.load %arg5[%c4, %c0_27] : memref<16x512xf32, #tpu.memory_space<vmem>>, vector<1x128xf32>
    %75 = vector.broadcast %74 : vector<1x128xf32> to vector<8x128xf32>
    %76 = arith.addf %73, %75 : vector<8x128xf32>
    %77 = arith.addf %29, %76 : vector<8x128xf32>
    %c5 = arith.constant 5 : index
    %c0_28 = arith.constant 0 : index
    %78 = vector.load %arg5[%c5, %c0_28] : memref<16x512xf32, #tpu.memory_space<vmem>>, vector<1x128xf32>
    %c6 = arith.constant 6 : index
    %c0_29 = arith.constant 0 : index
    %79 = vector.load %arg5[%c6, %c0_29] : memref<16x512xf32, #tpu.memory_space<vmem>>, vector<1x128xf32>
    %cst_30 = arith.constant dense<0.000000e+00> : vector<8xf32>
    %80 = vector.multi_reduction <add>, %77, %cst_30 [1] : vector<8x128xf32> to vector<8xf32>
    %81 = vector.shape_cast %80 : vector<8xf32> to vector<8x1xf32>
    %cst_31 = arith.constant 1.280000e+02 : f32
    %82 = vector.broadcast %cst_31 : f32 to vector<8x1xf32>
    %83 = arith.divf %81, %82 : vector<8x1xf32>
    %84 = vector.broadcast %83 : vector<8x1xf32> to vector<8x128xf32>
    %85 = arith.subf %77, %84 : vector<8x128xf32>
    %86 = arith.mulf %85, %85 : vector<8x128xf32>
    %cst_32 = arith.constant dense<0.000000e+00> : vector<8xf32>
    %87 = vector.multi_reduction <add>, %86, %cst_32 [1] : vector<8x128xf32> to vector<8xf32>
    %88 = vector.shape_cast %87 : vector<8xf32> to vector<8x1xf32>
    %cst_33 = arith.constant 1.280000e+02 : f32
    %89 = vector.broadcast %cst_33 : f32 to vector<8x1xf32>
    %90 = arith.divf %88, %89 : vector<8x1xf32>
    %91 = vector.broadcast %83 : vector<8x1xf32> to vector<8x128xf32>
    %92 = arith.subf %77, %91 : vector<8x128xf32>
    %cst_34 = arith.constant 9.99999996E-13 : f32
    %93 = vector.broadcast %cst_34 : f32 to vector<8x1xf32>
    %94 = arith.addf %90, %93 : vector<8x1xf32>
    %95 = math.rsqrt %94 : vector<8x1xf32>
    %96 = vector.broadcast %95 : vector<8x1xf32> to vector<8x128xf32>
    %97 = arith.mulf %92, %96 : vector<8x128xf32>
    %98 = vector.broadcast %78 : vector<1x128xf32> to vector<8x128xf32>
    %99 = arith.mulf %97, %98 : vector<8x128xf32>
    %100 = vector.broadcast %79 : vector<1x128xf32> to vector<8x128xf32>
    %101 = arith.addf %99, %100 : vector<8x128xf32>
    %102 = arith.truncf %101 : vector<8x128xf32> to vector<8x128xbf16>
    %c0_35 = arith.constant 0 : index
    %c512 = arith.constant 512 : index
    %103 = vector.load %arg3[%c0_35, %c512] : memref<128x1280xbf16, #tpu.memory_space<vmem>>, vector<128x512xbf16>
    %cst_36 = arith.constant dense<0.000000e+00> : vector<8x512xf32>
    %104 = tpu.matmul %102, %103, %cst_36 {dimension_numbers = #tpu.dot_dimension_numbers<[1], [0], [0], [1], [0, 0, 1, 1], [], []>} : vector<8x128xbf16>, vector<128x512xbf16>, vector<8x512xf32> -> vector<8x512xf32>
    %c7 = arith.constant 7 : index
    %c0_37 = arith.constant 0 : index
    %105 = vector.load %arg5[%c7, %c0_37] : memref<16x512xf32, #tpu.memory_space<vmem>>, vector<1x512xf32>
    %106 = vector.broadcast %105 : vector<1x512xf32> to vector<8x512xf32>
    %107 = arith.addf %104, %106 : vector<8x512xf32>
    %108 = arith.mulf %107, %107 : vector<8x512xf32>
    %109 = arith.mulf %107, %108 : vector<8x512xf32>
    %cst_38 = arith.constant 4.471500e-02 : f32
    %110 = vector.broadcast %cst_38 : f32 to vector<8x512xf32>
    %111 = arith.mulf %110, %109 : vector<8x512xf32>
    %112 = arith.addf %107, %111 : vector<8x512xf32>
    %cst_39 = arith.constant 0.797884583 : f32
    %113 = vector.broadcast %cst_39 : f32 to vector<8x512xf32>
    %114 = arith.mulf %113, %112 : vector<8x512xf32>
    %115 = math.tanh %114 : vector<8x512xf32>
    %cst_40 = arith.constant 1.000000e+00 : f32
    %116 = vector.broadcast %cst_40 : f32 to vector<8x512xf32>
    %117 = arith.addf %116, %115 : vector<8x512xf32>
    %cst_41 = arith.constant 5.000000e-01 : f32
    %118 = vector.broadcast %cst_41 : f32 to vector<8x512xf32>
    %119 = arith.mulf %118, %117 : vector<8x512xf32>
    %120 = arith.mulf %107, %119 : vector<8x512xf32>
    %121 = arith.truncf %120 : vector<8x512xf32> to vector<8x512xbf16>
    %c0_42 = arith.constant 0 : index
    %c0_43 = arith.constant 0 : index
    %122 = vector.load %arg4[%c0_42, %c0_43] : memref<512x128xbf16, #tpu.memory_space<vmem>>, vector<512x128xbf16>
    %cst_44 = arith.constant dense<0.000000e+00> : vector<8x128xf32>
    %123 = tpu.matmul %121, %122, %cst_44 {dimension_numbers = #tpu.dot_dimension_numbers<[1], [0], [0], [1], [0, 0, 1, 1], [], []>} : vector<8x512xbf16>, vector<512x128xbf16>, vector<8x128xf32> -> vector<8x128xf32>
    %c8 = arith.constant 8 : index
    %c0_45 = arith.constant 0 : index
    %124 = vector.load %arg5[%c8, %c0_45] : memref<16x512xf32, #tpu.memory_space<vmem>>, vector<1x128xf32>
    %125 = vector.broadcast %124 : vector<1x128xf32> to vector<8x128xf32>
    %126 = arith.addf %123, %125 : vector<8x128xf32>
    %127 = arith.addf %101, %126 : vector<8x128xf32>
    %c9 = arith.constant 9 : index
    %c0_46 = arith.constant 0 : index
    %128 = vector.load %arg5[%c9, %c0_46] : memref<16x512xf32, #tpu.memory_space<vmem>>, vector<1x128xf32>
    %c10 = arith.constant 10 : index
    %c0_47 = arith.constant 0 : index
    %129 = vector.load %arg5[%c10, %c0_47] : memref<16x512xf32, #tpu.memory_space<vmem>>, vector<1x128xf32>
    %cst_48 = arith.constant dense<0.000000e+00> : vector<8xf32>
    %130 = vector.multi_reduction <add>, %127, %cst_48 [1] : vector<8x128xf32> to vector<8xf32>
    %131 = vector.shape_cast %130 : vector<8xf32> to vector<8x1xf32>
    %cst_49 = arith.constant 1.280000e+02 : f32
    %132 = vector.broadcast %cst_49 : f32 to vector<8x1xf32>
    %133 = arith.divf %131, %132 : vector<8x1xf32>
    %134 = vector.broadcast %133 : vector<8x1xf32> to vector<8x128xf32>
    %135 = arith.subf %127, %134 : vector<8x128xf32>
    %136 = arith.mulf %135, %135 : vector<8x128xf32>
    %cst_50 = arith.constant dense<0.000000e+00> : vector<8xf32>
    %137 = vector.multi_reduction <add>, %136, %cst_50 [1] : vector<8x128xf32> to vector<8xf32>
    %138 = vector.shape_cast %137 : vector<8xf32> to vector<8x1xf32>
    %cst_51 = arith.constant 1.280000e+02 : f32
    %139 = vector.broadcast %cst_51 : f32 to vector<8x1xf32>
    %140 = arith.divf %138, %139 : vector<8x1xf32>
    %141 = vector.broadcast %133 : vector<8x1xf32> to vector<8x128xf32>
    %142 = arith.subf %127, %141 : vector<8x128xf32>
    %cst_52 = arith.constant 9.99999996E-13 : f32
    %143 = vector.broadcast %cst_52 : f32 to vector<8x1xf32>
    %144 = arith.addf %140, %143 : vector<8x1xf32>
    %145 = math.rsqrt %144 : vector<8x1xf32>
    %146 = vector.broadcast %145 : vector<8x1xf32> to vector<8x128xf32>
    %147 = arith.mulf %142, %146 : vector<8x128xf32>
    %148 = vector.broadcast %128 : vector<1x128xf32> to vector<8x128xf32>
    %149 = arith.mulf %147, %148 : vector<8x128xf32>
    %150 = vector.broadcast %129 : vector<1x128xf32> to vector<8x128xf32>
    %151 = arith.addf %149, %150 : vector<8x128xf32>
    %152 = arith.truncf %151 : vector<8x128xf32> to vector<8x128xbf16>
    %c0_53 = arith.constant 0 : index
    %c1024 = arith.constant 1024 : index
    %153 = vector.load %arg3[%c0_53, %c1024] : memref<128x1280xbf16, #tpu.memory_space<vmem>>, vector<128x128xbf16>
    %cst_54 = arith.constant dense<0.000000e+00> : vector<8x128xf32>
    %154 = tpu.matmul %152, %153, %cst_54 {dimension_numbers = #tpu.dot_dimension_numbers<[1], [0], [0], [1], [0, 0, 1, 1], [], []>} : vector<8x128xbf16>, vector<128x128xbf16>, vector<8x128xf32> -> vector<8x128xf32>
    %c11 = arith.constant 11 : index
    %c0_55 = arith.constant 0 : index
    %155 = vector.load %arg5[%c11, %c0_55] : memref<16x512xf32, #tpu.memory_space<vmem>>, vector<1x128xf32>
    %156 = vector.broadcast %155 : vector<1x128xf32> to vector<8x128xf32>
    %157 = arith.addf %154, %156 : vector<8x128xf32>
    %158 = math.tanh %157 : vector<8x128xf32>
    %159 = arith.truncf %158 : vector<8x128xf32> to vector<8x128xbf16>
    %c0_56 = arith.constant 0 : index
    %c1152 = arith.constant 1152 : index
    %160 = vector.load %arg3[%c0_56, %c1152] : memref<128x1280xbf16, #tpu.memory_space<vmem>>, vector<128x128xbf16>
    %cst_57 = arith.constant dense<0.000000e+00> : vector<8x128xf32>
    %161 = tpu.matmul %159, %160, %cst_57 {dimension_numbers = #tpu.dot_dimension_numbers<[1], [0], [0], [1], [0, 0, 1, 1], [], []>} : vector<8x128xbf16>, vector<128x128xbf16>, vector<8x128xf32> -> vector<8x128xf32>
    %c12 = arith.constant 12 : index
    %c0_58 = arith.constant 0 : index
    %162 = vector.load %arg5[%c12, %c0_58] : memref<16x512xf32, #tpu.memory_space<vmem>>, vector<1x128xf32>
    %163 = vector.broadcast %162 : vector<1x128xf32> to vector<8x128xf32>
    %164 = arith.addf %161, %163 : vector<8x128xf32>
    %165 = arith.negf %164 : vector<8x128xf32>
    %166 = math.exp %165 : vector<8x128xf32>
    %cst_59 = arith.constant 1.000000e+00 : f32
    %167 = vector.broadcast %cst_59 : f32 to vector<8x128xf32>
    %168 = arith.addf %167, %166 : vector<8x128xf32>
    %169 = arith.divf %167, %168 : vector<8x128xf32>
    %c0_60 = arith.constant 0 : index
    %c0_61 = arith.constant 0 : index
    %170 = vector.load %arg6[%c0_60, %c0_61] : memref<8x128xf32, #tpu.memory_space<vmem>>, vector<8x128xf32>
    tpu.vector_store %arg6[%c0_60, %c0_61], %169 {strides = array<i32>} : memref<8x128xf32, #tpu.memory_space<vmem>>, vector<8x128xf32>,
    return
  }
  func.func @transform_0(%arg0: i32) -> (i32, i32, i32) {
    %c0_i32 = arith.constant 0 : i32
    %c0_i32_0 = arith.constant 0 : i32
    %c0_i32_1 = arith.constant 0 : i32
    return %arg0, %c0_i32, %c0_i32_0 : i32, i32, i32
  }
  func.func @transform_1(%arg0: i32) -> (i32, i32) {
    %c0_i32 = arith.constant 0 : i32
    %c0_i32_0 = arith.constant 0 : i32
    return %arg0, %c0_i32 : i32, i32
  }
  func.func @transform_2(%arg0: i32) -> (i32, i32) {
    %c0_i32 = arith.constant 0 : i32
    %c0_i32_0 = arith.constant 0 : i32
    %c0_i32_1 = arith.constant 0 : i32
    return %c0_i32, %c0_i32_0 : i32, i32
  }
  func.func @transform_3(%arg0: i32) -> (i32, i32) {
    %c0_i32 = arith.constant 0 : i32
    %c0_i32_0 = arith.constant 0 : i32
    %c0_i32_1 = arith.constant 0 : i32
    return %c0_i32, %c0_i32_0 : i32, i32
  }
  func.func @transform_4(%arg0: i32) -> (i32, i32) {
    %c0_i32 = arith.constant 0 : i32
    %c0_i32_0 = arith.constant 0 : i32
    %c0_i32_1 = arith.constant 0 : i32
    return %c0_i32, %c0_i32_0 : i32, i32
  }
  func.func @transform_5(%arg0: i32) -> (i32, i32) {
    %c0_i32 = arith.constant 0 : i32
    %c0_i32_0 = arith.constant 0 : i32
    return %arg0, %c0_i32 : i32, i32
  }
}

</mosaic_0001>

<llo_original>
// kernel: tpu_custom_call.1
$region0: #{tpu_custom_call.1}
  #allocation0 [shape = 'u32[]', space=smem, size = 0x4, offset = 0x4, fixed_abs, tag = 'smem constant byte address 0x4 - core index']
  #allocation1 [shape = 'u32[72,128]{1,0:T(1,128)}', space=vmem, size = 0x9000, scoped, tag = 'internal scratch']
  %s0 = inlined_call_operand.hbm [shape: bf16[16,16,128], index: 0, kind: input, shape index: {}]
  %s1 = inlined_call_operand.hbm [shape: f32[16,16], index: 1, kind: input, shape index: {}]
  %s2 = inlined_call_operand.hbm [shape: bf16[128,1280], index: 2, kind: input, shape index: {}]
  %s3 = inlined_call_operand.hbm [shape: bf16[512,128], index: 3, kind: input, shape index: {}]
  %s4 = inlined_call_operand.hbm [shape: f32[16,512], index: 4, kind: input, shape index: {}]
  %s5 = inlined_call_operand.hbm [shape: f32[16,128], index: 5, kind: output, shape index: {}]
  %s6 = sld [smem:[#allocation0]]
  $region73: #{tpu_custom_call.1} parent=0
    _
  %s8 = ssub.s32 1, %s6
  %s9 = scalar_select 0, %s8, %s6
  $region1: #{tpu_custom_call.1} parent=0
    #allocation2 [shape = 'u8[65536]{0}', space=vmem, size = 0x10000, scoped, tag = 'input window, operand 0']
    #allocation3 [shape = 's32[2]{0}', space=sflag, size = 0x8, scoped, tag = 'scoped memory for tpu_custom_call.1']
    #allocation4 [shape = 's32[2]{0}', space=sflag, size = 0x8, scoped, tag = 'scoped memory for tpu_custom_call.1']
    #allocation5 [shape = 'u8[8192]{0}', space=vmem, size = 0x2000, scoped, tag = 'input window, operand 1']
    #allocation6 [shape = 's32[2]{0}', space=sflag, size = 0x8, scoped, tag = 'scoped memory for tpu_custom_call.1']
    #allocation7 [shape = 'u8[327680]{0}', space=vmem, size = 0x50000, scoped, tag = 'input window, operand 2, single buffered']
    #allocation8 [shape = 'u8[131072]{0}', space=vmem, size = 0x20000, scoped, tag = 'input window, operand 3, single buffered']
    #allocation9 [shape = 's32[1]{0}', space=sflag, size = 0x4, scoped, tag = 'scoped memory for tpu_custom_call.1']
    #allocation10 [shape = 'u8[32768]{0}', space=vmem, size = 0x8000, scoped, tag = 'input window, operand 4, single buffered']
    #allocation11 [shape = 'u8[8192]{0}', space=vmem, size = 0x2000, scoped, tag = 'output window, operand 0']
    %10 = vsyncpa [#allocation3], 0
    %s11 = scalar_lea.sflag [#allocation3], 1
    %12 = vsyncpa %s11, 0
    %13 = vsyncpa [#allocation6], 0
    %s14 = scalar_lea.sflag [#allocation6], 1
    %15 = vsyncpa %s14, 0
    %16 = vsyncpa [#allocation9], 0
    %17 = vsyncpa [#allocation4], 0
    %s18 = scalar_lea.sflag [#allocation4], 1
    %19 = vsyncpa %s18, 0
    loop: start=0, step=1, limit=4
    $region2: #{tpu_custom_call.1} parent=1 // loop_pre_header
      _
    $region3: #{tpu_custom_call.1} parent=1 // loop_header
      %s21 = sphi 0, %s25
      %p22 = scmp.ge.s32.totalorder %s21, 4
      %s31 = sphi 0, %s33
      %s34 = sphi 0, %s31
      %s35 = sphi 0, %s34
      %s51 = sphi 0, %s35
      %s57 = sphi 0, %s59
      %s60 = sphi 0, %s57
      %s61 = sphi 0, %s60
      %s77 = sphi 0, %s61
      %s81 = sphi 0, %s81
      %s83 = sphi 0, %s81
      %s84 = sphi 0, %s83
      %s98 = sphi 0, %s84
      %s102 = sphi 0, %s102
      %s104 = sphi 0, %s102
      %s105 = sphi 0, %s104
      %s119 = sphi 0, %s105
      %s123 = sphi 0, %s123
      %s125 = sphi 0, %s123
      %s126 = sphi 0, %s125
      %s140 = sphi 0, %s126
      %s146 = sphi 0, %s148
      %s149 = sphi 0, %s146
      %s150 = sphi 0, %s149
      %s166 = sphi 0, %s150
    $region4: #{tpu_custom_call.1} parent=1 // loop_header_branch
      %24 = sbr.rel (%p22) target = $region8
    $region5: #{tpu_custom_call.1} parent=1 // loop_body
      %s26 = ssub.s32 %s21, 1
      %s27 = ssub.s32 %s21, 2
      %s28 = sadd.s32 %s21, 1
      %s29 = ssub.s32 %s21, %s28
      %p30 = scmp.eq.s32.totalorder %s29, 0
      %s32 = sadd.s32 %s31, 1
      %s33 = scalar_select %p30, %s31, %s32
      %p36 = pneg %p30
      %p37 = scmp.eq.s32.totalorder %s21, 1
      %p38 = por %p36, %p37
      %p39 = scmp.ne.s32.totalorder %s31, %s34
      %p40 = scmp.eq.s32.totalorder %s21, 0
      %p41 = por %p39, %p40
      %p42 = scmp.ne.s32.totalorder %s31, %s34
      %p43 = scmp.eq.s32.totalorder %s26, 1
      %p44 = por %p42, %p43
      %p45 = scmp.ne.s32.totalorder %s34, %s35
      %p46 = scmp.eq.s32.totalorder %s26, 0
      %p47 = por %p45, %p46
      %p48 = scmp.ne.s32.totalorder %s34, %s35
      %p49 = scmp.eq.s32.totalorder %s27, 1
      %p50 = por %p48, %p49
      %p52 = scmp.ne.s32.totalorder %s35, %s51
      %p53 = scmp.eq.s32.totalorder %s27, 0
      %p54 = por %p52, %p53
      %s55 = ssub.s32 %s21, %s28
      %p56 = scmp.eq.s32.totalorder %s55, 0
      %s58 = sadd.s32 %s57, 1
      %s59 = scalar_select %p56, %s57, %s58
      %p62 = pneg %p56
      %p63 = scmp.eq.s32.totalorder %s21, 1
      %p64 = por %p62, %p63
      %p65 = scmp.ne.s32.totalorder %s57, %s60
      %p66 = scmp.eq.s32.totalorder %s21, 0
      %p67 = por %p65, %p66
      %p68 = scmp.ne.s32.totalorder %s57, %s60
      %p69 = scmp.eq.s32.totalorder %s26, 1
      %p70 = por %p68, %p69
      %p71 = scmp.ne.s32.totalorder %s60, %s61
      %p72 = scmp.eq.s32.totalorder %s26, 0
      %p73 = por %p71, %p72
      %p74 = scmp.ne.s32.totalorder %s60, %s61
      %p75 = scmp.eq.s32.totalorder %s27, 1
      %p76 = por %p74, %p75
      %p78 = scmp.ne.s32.totalorder %s61, %s77
      %p79 = scmp.eq.s32.totalorder %s27, 0
      %p80 = por %p78, %p79
      %s82 = sadd.s32 %s81, 1
      %p85 = scmp.eq.s32.totalorder %s21, 1
      %p86 = scmp.ne.s32.totalorder %s81, %s83
      %p87 = scmp.eq.s32.totalorder %s21, 0
      %p88 = por %p86, %p87
      %p89 = scmp.ne.s32.totalorder %s81, %s83
      %p90 = scmp.eq.s32.totalorder %s26, 1
      %p91 = por %p89, %p90
      %p92 = scmp.ne.s32.totalorder %s83, %s84
      %p93 = scmp.eq.s32.totalorder %s26, 0
      %p94 = por %p92, %p93
      %p95 = scmp.ne.s32.totalorder %s83, %s84
      %p96 = scmp.eq.s32.totalorder %s27, 1
      %p97 = por %p95, %p96
      %p99 = scmp.ne.s32.totalorder %s84, %s98
      %p100 = scmp.eq.s32.totalorder %s27, 0
      %p101 = por %p99, %p100
      %s103 = sadd.s32 %s102, 1
      %p106 = scmp.eq.s32.totalorder %s21, 1
      %p107 = scmp.ne.s32.totalorder %s102, %s104
      %p108 = scmp.eq.s32.totalorder %s21, 0
      %p109 = por %p107, %p108
      %p110 = scmp.ne.s32.totalorder %s102, %s104
      %p111 = scmp.eq.s32.totalorder %s26, 1
      %p112 = por %p110, %p111
      %p113 = scmp.ne.s32.totalorder %s104, %s105
      %p114 = scmp.eq.s32.totalorder %s26, 0
      %p115 = por %p113, %p114
      %p116 = scmp.ne.s32.totalorder %s104, %s105
      %p117 = scmp.eq.s32.totalorder %s27, 1
      %p118 = por %p116, %p117
      %p120 = scmp.ne.s32.totalorder %s105, %s119
      %p121 = scmp.eq.s32.totalorder %s27, 0
      %p122 = por %p120, %p121
      %s124 = sadd.s32 %s123, 1
      %p127 = scmp.eq.s32.totalorder %s21, 1
      %p128 = scmp.ne.s32.totalorder %s123, %s125
      %p129 = scmp.eq.s32.totalorder %s21, 0
      %p130 = por %p128, %p129
      %p131 = scmp.ne.s32.totalorder %s123, %s125
      %p132 = scmp.eq.s32.totalorder %s26, 1
      %p133 = por %p131, %p132
      %p134 = scmp.ne.s32.totalorder %s125, %s126
      %p135 = scmp.eq.s32.totalorder %s26, 0
      %p136 = por %p134, %p135
      %p137 = scmp.ne.s32.totalorder %s125, %s126
      %p138 = scmp.eq.s32.totalorder %s27, 1
      %p139 = por %p137, %p138
      %p141 = scmp.ne.s32.totalorder %s126, %s140
      %p142 = scmp.eq.s32.totalorder %s27, 0
      %p143 = por %p141, %p142
      %s144 = ssub.s32 %s21, %s28
      %p145 = scmp.eq.s32.totalorder %s144, 0
      %s147 = sadd.s32 %s146, 1
      %s148 = scalar_select %p145, %s146, %s147
      %p151 = pneg %p145
      %p152 = scmp.eq.s32.totalorder %s21, 1
      %p153 = por %p151, %p152
      %p154 = scmp.ne.s32.totalorder %s146, %s149
      %p155 = scmp.eq.s32.totalorder %s21, 0
      %p156 = por %p154, %p155
      %p157 = scmp.ne.s32.totalorder %s146, %s149
      %p158 = scmp.eq.s32.totalorder %s26, 1
      %p159 = por %p157, %p158
      %p160 = scmp.ne.s32.totalorder %s149, %s150
      %p161 = scmp.eq.s32.totalorder %s26, 0
      %p162 = por %p160, %p161
      %p163 = scmp.ne.s32.totalorder %s149, %s150
      %p164 = scmp.eq.s32.totalorder %s27, 1
      %p165 = por %p163, %p164
      %p167 = scmp.ne.s32.totalorder %s150, %s166
      %p168 = scmp.eq.s32.totalorder %s27, 0
      %p169 = por %p167, %p168
      %p170 = scmp.le.s32.totalorder 1, %s21
      %p171 = scmp.lt.s32.totalorder %s21, 3
      %p172 = pnand %p170, %p171
      %p173 = pneg %p172
      // Predicated region
      $region9: #{tpu_custom_call.1} parent=5 // pred_check
        _
      $region10: #{tpu_custom_call.1} parent=5 // pred_check_branch
        %175 = sbr.rel (%p172) target = $region12
      $region11: #{tpu_custom_call.1} parent=5 // pred_region
        %s176 = ssub.s32 %s21, 1
        // Predicated region
        $region13: #{tpu_custom_call.1} parent=11 // pred_check
          %p177 = pneg %p94
        $region14: #{tpu_custom_call.1} parent=11 // pred_check_branch
          %179 = sbr.rel (%p177) target = $region16
        $region15: #{tpu_custom_call.1} parent=11 // pred_region
          %181 = vsyncadd [#allocation6], 0
          %s182 = sshll.u32 %s2, 4
          %s183 = int_to_ptr.hbm [resolvable:$true] %s182
          %s184 = sshll.u32 [#allocation7], 4
          %s185 = int_to_ptr.vmem [resolvable:$true] %s184
          %190 = dma.hbm_to_vmem [thread:$0]  %s183, 10240, %s185, [#allocation6], 640, 640, 40
        $region16: #{tpu_custom_call.1} parent=11 // pred_fallthru
          _
        // Predicated region
        $region17: #{tpu_custom_call.1} parent=11 // pred_check
          %p191 = pneg %p115
        $region18: #{tpu_custom_call.1} parent=11 // pred_check_branch
          %193 = sbr.rel (%p191) target = $region20
        $region19: #{tpu_custom_call.1} parent=11 // pred_region
          %195 = vsyncadd [#allocation9], 0
          %s196 = sshll.u32 %s3, 4
          %s197 = int_to_ptr.hbm [resolvable:$true] %s196
          %s198 = sshll.u32 [#allocation8], 4
          %s199 = int_to_ptr.vmem [resolvable:$true] %s198
          %204 = dma.hbm_to_vmem [thread:$0]  %s197, 4096, %s199, [#allocation9], 64, 64, 4
        $region20: #{tpu_custom_call.1} parent=11 // pred_fallthru
          _
        // Predicated region
        $region21: #{tpu_custom_call.1} parent=11 // pred_check
          %p205 = pneg %p136
        $region22: #{tpu_custom_call.1} parent=11 // pred_check_branch
          %207 = sbr.rel (%p205) target = $region24
        $region23: #{tpu_custom_call.1} parent=11 // pred_region
          %209 = vsyncadd [#allocation9], 0
          %s210 = sshll.u32 %s4, 4
          %s211 = int_to_ptr.hbm [resolvable:$true] %s210
          %s212 = sshll.u32 [#allocation10], 4
          %s213 = int_to_ptr.vmem [resolvable:$true] %s212
          %218 = dma.hbm_to_vmem [thread:$0]  %s211, 1024, %s213, [#allocation9], 512, 512, 32
        $region24: #{tpu_custom_call.1} parent=11 // pred_fallthru
          _
      $region12: #{tpu_custom_call.1} parent=5 // pred_fallthru
        _
      %p219 = scmp.lt.s32.totalorder %s21, 2
      // Predicated region
      $region25: #{tpu_custom_call.1} parent=5 // pred_check
        %p220 = pneg %p219
      $region26: #{tpu_custom_call.1} parent=5 // pred_check_branch
        %222 = sbr.rel (%p220) target = $region28
      $region27: #{tpu_custom_call.1} parent=5 // pred_region
        // Predicated region
        $region29: #{tpu_custom_call.1} parent=27 // pred_check
          %p223 = pneg %p41
        $region30: #{tpu_custom_call.1} parent=27 // pred_check_branch
          %225 = sbr.rel (%p223) target = $region32
        $region31: #{tpu_custom_call.1} parent=27 // pred_region
          %s226 = sand.u32 %s31, 1
          %s227 = scalar_lea.sflag [#allocation3], %s226
          %s228 = sand.u32 %s31, 1
          %s229 = smul.addr %s228, 64
          %s230 = scalar_lea.vmem [#allocation2], %s229
          %s231 = smul.u32 8, %s21
          %233 = vsyncadd %s227, 0
          %s234 = smul.addr %s231, 2
          %s235 = smul.addr %s234, 4
          %s236 = scalar_lea.hbm %s0, %s235
          %s237 = sshll.u32 %s236, 4
          %s238 = int_to_ptr.hbm [resolvable:$true] %s237
          %s239 = sshll.u32 %s230, 4
          %s240 = int_to_ptr.vmem [resolvable:$true] %s239
          %245 = dma.hbm_to_vmem [thread:$0]  %s238, 1024, %s240, %s227, 64, 64, 4
        $region32: #{tpu_custom_call.1} parent=27 // pred_fallthru
          _
        // Predicated region
        $region33: #{tpu_custom_call.1} parent=27 // pred_check
          %p246 = pneg %p67
        $region34: #{tpu_custom_call.1} parent=27 // pred_check_branch
          %248 = sbr.rel (%p246) target = $region36
        $region35: #{tpu_custom_call.1} parent=27 // pred_region
          %s249 = sand.u32 %s21, 1
          %s250 = scalar_lea.sflag [#allocation6], %s249
          %s251 = sand.u32 %s57, 1
          %s252 = smul.addr %s251, 8
          %s253 = scalar_lea.vmem [#allocation5], %s252
          %255 = vsyncadd %s250, 0
          %s256 = smul.addr %s21, 8
          %s257 = scalar_lea.hbm %s1, %s256
          %s259 = sshll.u32 %s257, 4
          %s260 = int_to_ptr.hbm [resolvable:$true] %s259
          %s261 = sshll.u32 %s253, 4
          %s262 = int_to_ptr.vmem [resolvable:$true] %s261
          %264 = dma.hbm_to_vmem [thread:$0]  %s260, 128, %s262, %s250
        $region36: #{tpu_custom_call.1} parent=27 // pred_fallthru
          _
      $region28: #{tpu_custom_call.1} parent=5 // pred_fallthru
        _
      %p265 = scmp.le.s32.totalorder 1, %s21
      %p266 = scmp.lt.s32.totalorder %s21, 3
      %p267 = pnand %p265, %p266
      %p268 = pneg %p267
      // Predicated region
      $region37: #{tpu_custom_call.1} parent=5 // pred_check
        _
      $region38: #{tpu_custom_call.1} parent=5 // pred_check_branch
        %270 = sbr.rel (%p267) target = $region40
      $region39: #{tpu_custom_call.1} parent=5 // pred_region
        %s271 = ssub.s32 %s21, 1
        %s272 = sand.u32 %s34, 1
        %s273 = scalar_lea.sflag [#allocation3], %s272
        %s274 = sand.u32 %s34, 1
        %s275 = smul.addr %s274, 64
        %s276 = scalar_lea.vmem [#allocation2], %s275
        // Predicated region
        $region41: #{tpu_custom_call.1} parent=39 // pred_check
          %p277 = pneg %p47
        $region42: #{tpu_custom_call.1} parent=39 // pred_check_branch
          %279 = sbr.rel (%p277) target = $region44
        $region43: #{tpu_custom_call.1} parent=39 // pred_region
          %281 = dma.done %s273, 1024
        $region44: #{tpu_custom_call.1} parent=39 // pred_fallthru
          _
        %s282 = sand.u32 %s26, 1
        %s283 = scalar_lea.sflag [#allocation6], %s282
        %s284 = sand.u32 %s60, 1
        %s285 = smul.addr %s284, 8
        %s286 = scalar_lea.vmem [#allocation5], %s285
        // Predicated region
        $region45: #{tpu_custom_call.1} parent=39 // pred_check
          %p287 = pneg %p73
        $region46: #{tpu_custom_call.1} parent=39 // pred_check_branch
          %289 = sbr.rel (%p287) target = $region48
        $region47: #{tpu_custom_call.1} parent=39 // pred_region
          %291 = dma.done %s283, 128
        $region48: #{tpu_custom_call.1} parent=39 // pred_fallthru
          _
        // Predicated region
        $region49: #{tpu_custom_call.1} parent=39 // pred_check
          %p292 = pneg %p94
        $region50: #{tpu_custom_call.1} parent=39 // pred_check_branch
          %294 = sbr.rel (%p292) target = $region52
        $region51: #{tpu_custom_call.1} parent=39 // pred_region
          %296 = dma.done [#allocation6], 10240
        $region52: #{tpu_custom_call.1} parent=39 // pred_fallthru
          _
        // Predicated region
        $region53: #{tpu_custom_call.1} parent=39 // pred_check
          %p297 = pneg %p115
        $region54: #{tpu_custom_call.1} parent=39 // pred_check_branch
          %299 = sbr.rel (%p297) target = $region56
        $region55: #{tpu_custom_call.1} parent=39 // pred_region
          %301 = dma.done [#allocation9], 4096
        $region56: #{tpu_custom_call.1} parent=39 // pred_fallthru
          _
        // Predicated region
        $region57: #{tpu_custom_call.1} parent=39 // pred_check
          %p302 = pneg %p136
        $region58: #{tpu_custom_call.1} parent=39 // pred_check_branch
          %304 = sbr.rel (%p302) target = $region60
        $region59: #{tpu_custom_call.1} parent=39 // pred_region
          %306 = dma.done [#allocation9], 1024
        $region60: #{tpu_custom_call.1} parent=39 // pred_fallthru
          _
        %s307 = sand.u32 %s34, 1
        %s308 = scalar_lea.sflag [#allocation3], %s307
        %s309 = sand.u32 %s34, 1
        %s310 = smul.addr %s309, 64
        %s311 = scalar_lea.vmem [#allocation2], %s310
        %p312 = pneg %p47
        %p313 = pneg %p44
        %s314 = sand.u32 %s26, 1
        %s315 = scalar_lea.sflag [#allocation6], %s314
        %s316 = sand.u32 %s60, 1
        %s317 = smul.addr %s316, 8
        %s318 = scalar_lea.vmem [#allocation5], %s317
        %p319 = pneg %p73
        %p320 = pneg %p70
        %p321 = pneg %p94
        %p322 = pneg %p91
        %p323 = pneg %p115
        %p324 = pneg %p112
        %p325 = pneg %p136
        %p326 = pneg %p133
        %p327 = pneg %p162
        %p328 = pneg %p159
        %s329 = sand.u32 %s149, 1
        %s330 = scalar_lea.sflag [#allocation4], %s329
        %s331 = sand.u32 %s149, 1
        %s332 = smul.addr %s331, 8
        %s333 = scalar_lea.vmem [#allocation11], %s332
        %s334 = smul.u32 8, %s26
        %v335 = vld [vmem:[%s276] sm:$0xf]
        %v336 = vld [vmem:[%s276 + $0x4] sm:$0xf]
        %v337 = vld [vmem:[%s276 + $0x8] sm:$0xf]
        %v338 = vld [vmem:[%s276 + $0xc] sm:$0xf]
        %v339 = vld [vmem:[%s276 + $0x10] sm:$0xf]
        %v340 = vld [vmem:[%s276 + $0x14] sm:$0xf]
        %v341 = vld [vmem:[%s276 + $0x18] sm:$0xf]
        %v342 = vld [vmem:[%s276 + $0x1c] sm:$0xf]
        %v343 = vld [vmem:[%s276 + $0x20] sm:$0xf]
        %v344 = vld [vmem:[%s276 + $0x24] sm:$0xf]
        %v345 = vld [vmem:[%s276 + $0x28] sm:$0xf]
        %v346 = vld [vmem:[%s276 + $0x2c] sm:$0xf]
        %v347 = vld [vmem:[%s276 + $0x30] sm:$0xf]
        %v348 = vld [vmem:[%s276 + $0x34] sm:$0xf]
        %v349 = vld [vmem:[%s276 + $0x38] sm:$0xf]
        %v350 = vld [vmem:[%s276 + $0x3c] sm:$0xf]
        %v351 = vunpack.c.l.bf16 %v335
        %v352 = vunpack.c.l.bf16 %v336
        %v353 = vunpack.c.l.bf16 %v337
        %v354 = vunpack.c.l.bf16 %v338
        %v355 = vunpack.c.l.bf16 %v339
        %v356 = vunpack.c.l.bf16 %v340
        %v357 = vunpack.c.l.bf16 %v341
        %v358 = vunpack.c.l.bf16 %v342
        %v359 = vunpack.c.l.bf16 %v343
        %v360 = vunpack.c.l.bf16 %v344
        %v361 = vunpack.c.l.bf16 %v345
        %v362 = vunpack.c.l.bf16 %v346
        %v363 = vunpack.c.l.bf16 %v347
        %v364 = vunpack.c.l.bf16 %v348
        %v365 = vunpack.c.l.bf16 %v349
        %v366 = vunpack.c.l.bf16 %v350
        %v367 = vld [vmem:[#allocation10] ss:$0 sm:$0xff]
        %v368 = vld [vmem:[#allocation10 + $0x1] ss:$0 sm:$0xff]
        %369 = vadd.xlane.f32.xlu0 %v351
        %v370 = vpop.xlane.xlu0 %369
        %371 = vadd.xlane.f32.xlu0 %v352
        %v372 = vpop.xlane.xlu0 %371
        %373 = vadd.xlane.f32.xlu0 %v353
        %v374 = vpop.xlane.xlu0 %373
        %375 = vadd.xlane.f32.xlu0 %v354
        %v376 = vpop.xlane.xlu0 %375
        %377 = vadd.xlane.f32.xlu0 %v355
        %v378 = vpop.xlane.xlu0 %377
        %379 = vadd.xlane.f32.xlu0 %v356
        %v380 = vpop.xlane.xlu0 %379
        %381 = vadd.xlane.f32.xlu0 %v357
        %v382 = vpop.xlane.xlu0 %381
        %383 = vadd.xlane.f32.xlu0 %v358
        %v384 = vpop.xlane.xlu0 %383
        %385 = vadd.xlane.f32.xlu0 %v359
        %v386 = vpop.xlane.xlu0 %385
        %387 = vadd.xlane.f32.xlu0 %v360
        %v388 = vpop.xlane.xlu0 %387
        %389 = vadd.xlane.f32.xlu0 %v361
        %v390 = vpop.xlane.xlu0 %389
        %391 = vadd.xlane.f32.xlu0 %v362
        %v392 = vpop.xlane.xlu0 %391
        %393 = vadd.xlane.f32.xlu0 %v363
        %v394 = vpop.xlane.xlu0 %393
        %395 = vadd.xlane.f32.xlu0 %v364
        %v396 = vpop.xlane.xlu0 %395
        %397 = vadd.xlane.f32.xlu0 %v365
        %v398 = vpop.xlane.xlu0 %397
        %399 = vadd.xlane.f32.xlu0 %v366
        %v400 = vpop.xlane.xlu0 %399
        %v401 = vrcp.pop 128.0
        %v402 = vmul.f32 128.0, %v401
        %v403 = vsub.f32 1.0, %v402
        %v404 = vmul.f32 %v401, %v403
        %v405 = vadd.f32 %v401, %v404
        %vm406 = vweird.f32 %v401
        %v407 = vsel %vm406, %v401, %v405
        %v408 = vmul.f32 %v370, %v407
        %v409 = vmul.f32 %v372, %v407
        %v410 = vmul.f32 %v374, %v407
        %v411 = vmul.f32 %v376, %v407
        %v412 = vmul.f32 %v378, %v407
        %v413 = vmul.f32 %v380, %v407
        %v414 = vmul.f32 %v382, %v407
        %v415 = vmul.f32 %v384, %v407
        %v416 = vmul.f32 %v386, %v407
        %v417 = vmul.f32 %v388, %v407
        %v418 = vmul.f32 %v390, %v407
        %v419 = vmul.f32 %v392, %v407
        %v420 = vmul.f32 %v394, %v407
        %v421 = vmul.f32 %v396, %v407
        %v422 = vmul.f32 %v398, %v407
        %v423 = vmul.f32 %v400, %v407
        %v424 = vsub.f32 %v351, %v408
        %v425 = vsub.f32 %v352, %v409
        %v426 = vsub.f32 %v353, %v410
        %v427 = vsub.f32 %v354, %v411
        %v428 = vsub.f32 %v355, %v412
        %v429 = vsub.f32 %v356, %v413
        %v430 = vsub.f32 %v357, %v414
        %v431 = vsub.f32 %v358, %v415
        %v432 = vsub.f32 %v359, %v416
        %v433 = vsub.f32 %v360, %v417
        %v434 = vsub.f32 %v361, %v418
        %v435 = vsub.f32 %v362, %v419
        %v436 = vsub.f32 %v363, %v420
        %v437 = vsub.f32 %v364, %v421
        %v438 = vsub.f32 %v365, %v422
        %v439 = vsub.f32 %v366, %v423
        %v440 = vmul.f32 %v424, %v424
        %v441 = vmul.f32 %v425, %v425
        %v442 = vmul.f32 %v426, %v426
        %v443 = vmul.f32 %v427, %v427
        %v444 = vmul.f32 %v428, %v428
        %v445 = vmul.f32 %v429, %v429
        %v446 = vmul.f32 %v430, %v430
        %v447 = vmul.f32 %v431, %v431
        %v448 = vmul.f32 %v432, %v432
        %v449 = vmul.f32 %v433, %v433
        %v450 = vmul.f32 %v434, %v434
        %v451 = vmul.f32 %v435, %v435
        %v452 = vmul.f32 %v436, %v436
        %v453 = vmul.f32 %v437, %v437
        %v454 = vmul.f32 %v438, %v438
        %v455 = vmul.f32 %v439, %v439
        %456 = vadd.xlane.f32.xlu0 %v440
        %v457 = vpop.xlane.xlu0 %456
        %458 = vadd.xlane.f32.xlu0 %v441
        %v459 = vpop.xlane.xlu0 %458
        %460 = vadd.xlane.f32.xlu0 %v442
        %v461 = vpop.xlane.xlu0 %460
        %462 = vadd.xlane.f32.xlu0 %v443
        %v463 = vpop.xlane.xlu0 %462
        %464 = vadd.xlane.f32.xlu0 %v444
        %v465 = vpop.xlane.xlu0 %464
        %466 = vadd.xlane.f32.xlu0 %v445
        %v467 = vpop.xlane.xlu0 %466
        %468 = vadd.xlane.f32.xlu0 %v446
        %v469 = vpop.xlane.xlu0 %468
        %470 = vadd.xlane.f32.xlu0 %v447
        %v471 = vpop.xlane.xlu0 %470
        %472 = vadd.xlane.f32.xlu0 %v448
        %v473 = vpop.xlane.xlu0 %472
        %474 = vadd.xlane.f32.xlu0 %v449
        %v475 = vpop.xlane.xlu0 %474
        %476 = vadd.xlane.f32.xlu0 %v450
        %v477 = vpop.xlane.xlu0 %476
        %478 = vadd.xlane.f32.xlu0 %v451
        %v479 = vpop.xlane.xlu0 %478
        %480 = vadd.xlane.f32.xlu0 %v452
        %v481 = vpop.xlane.xlu0 %480
        %482 = vadd.xlane.f32.xlu0 %v453
        %v483 = vpop.xlane.xlu0 %482
        %484 = vadd.xlane.f32.xlu0 %v454
        %v485 = vpop.xlane.xlu0 %484
        %486 = vadd.xlane.f32.xlu0 %v455
        %v487 = vpop.xlane.xlu0 %486
        %v488 = vmul.f32 %v457, %v407
        %v489 = vmul.f32 %v459, %v407
        %v490 = vmul.f32 %v461, %v407
        %v491 = vmul.f32 %v463, %v407
        %v492 = vmul.f32 %v465, %v407
        %v493 = vmul.f32 %v467, %v407
        %v494 = vmul.f32 %v469, %v407
        %v495 = vmul.f32 %v471, %v407
        %v496 = vmul.f32 %v473, %v407
        %v497 = vmul.f32 %v475, %v407
        %v498 = vmul.f32 %v477, %v407
        %v499 = vmul.f32 %v479, %v407
        %v500 = vmul.f32 %v481, %v407
        %v501 = vmul.f32 %v483, %v407
        %v502 = vmul.f32 %v485, %v407
        %v503 = vmul.f32 %v487, %v407
        %v504 = vadd.f32 %v488, 1e-12
        %v505 = vadd.f32 %v489, 1e-12
        %v506 = vadd.f32 %v490, 1e-12
        %v507 = vadd.f32 %v491, 1e-12
        %v508 = vadd.f32 %v492, 1e-12
        %v509 = vadd.f32 %v493, 1e-12
        %v510 = vadd.f32 %v494, 1e-12
        %v511 = vadd.f32 %v495, 1e-12
        %v512 = vadd.f32 %v496, 1e-12
        %v513 = vadd.f32 %v497, 1e-12
        %v514 = vadd.f32 %v498, 1e-12
        %v515 = vadd.f32 %v499, 1e-12
        %v516 = vadd.f32 %v500, 1e-12
        %v517 = vadd.f32 %v501, 1e-12
        %v518 = vadd.f32 %v502, 1e-12
        %v519 = vadd.f32 %v503, 1e-12
        %v520 = vrsqrt.pop %v504
        %v521 = vmul.f32 %v520, %v504
        %v522 = vmul.f32 %v521, %v520
        %v523 = vmul.f32 0.5, %v522
        %v524 = vsub.f32 1.5, %v523
        %v525 = vmul.f32 %v520, %v524
        %vm526 = vweird.f32 %v504
        %vm527 = vweird.f32 %v520
        %vm528 = vmor %vm526, %vm527
        %v529 = vsel %vm528, %v520, %v525
        %v530 = vrsqrt.pop %v505
        %v531 = vmul.f32 %v530, %v505
        %v532 = vmul.f32 %v531, %v530
        %v533 = vmul.f32 0.5, %v532
        %v534 = vsub.f32 1.5, %v533
        %v535 = vmul.f32 %v530, %v534
        %vm536 = vweird.f32 %v505
        %vm537 = vweird.f32 %v530
        %vm538 = vmor %vm536, %vm537
        %v539 = vsel %vm538, %v530, %v535
        %v540 = vrsqrt.pop %v506
        %v541 = vmul.f32 %v540, %v506
        %v542 = vmul.f32 %v541, %v540
        %v543 = vmul.f32 0.5, %v542
        %v544 = vsub.f32 1.5, %v543
        %v545 = vmul.f32 %v540, %v544
        %vm546 = vweird.f32 %v506
        %vm547 = vweird.f32 %v540
        %vm548 = vmor %vm546, %vm547
        %v549 = vsel %vm548, %v540, %v545
        %v550 = vrsqrt.pop %v507
        %v551 = vmul.f32 %v550, %v507
        %v552 = vmul.f32 %v551, %v550
        %v553 = vmul.f32 0.5, %v552
        %v554 = vsub.f32 1.5, %v553
        %v555 = vmul.f32 %v550, %v554
        %vm556 = vweird.f32 %v507
        %vm557 = vweird.f32 %v550
        %vm558 = vmor %vm556, %vm557
        %v559 = vsel %vm558, %v550, %v555
        %v560 = vrsqrt.pop %v508
        %v561 = vmul.f32 %v560, %v508
        %v562 = vmul.f32 %v561, %v560
        %v563 = vmul.f32 0.5, %v562
        %v564 = vsub.f32 1.5, %v563
        %v565 = vmul.f32 %v560, %v564
        %vm566 = vweird.f32 %v508
        %vm567 = vweird.f32 %v560
        %vm568 = vmor %vm566, %vm567
        %v569 = vsel %vm568, %v560, %v565
        %v570 = vrsqrt.pop %v509
        %v571 = vmul.f32 %v570, %v509
        %v572 = vmul.f32 %v571, %v570
        %v573 = vmul.f32 0.5, %v572
        %v574 = vsub.f32 1.5, %v573
        %v575 = vmul.f32 %v570, %v574
        %vm576 = vweird.f32 %v509
        %vm577 = vweird.f32 %v570
        %vm578 = vmor %vm576, %vm577
        %v579 = vsel %vm578, %v570, %v575
        %v580 = vrsqrt.pop %v510
        %v581 = vmul.f32 %v580, %v510
        %v582 = vmul.f32 %v581, %v580
        %v583 = vmul.f32 0.5, %v582
        %v584 = vsub.f32 1.5, %v583
        %v585 = vmul.f32 %v580, %v584
        %vm586 = vweird.f32 %v510
        %vm587 = vweird.f32 %v580
        %vm588 = vmor %vm586, %vm587
        %v589 = vsel %vm588, %v580, %v585
        %v590 = vrsqrt.pop %v511
        %v591 = vmul.f32 %v590, %v511
        %v592 = vmul.f32 %v591, %v590
        %v593 = vmul.f32 0.5, %v592
        %v594 = vsub.f32 1.5, %v593
        %v595 = vmul.f32 %v590, %v594
        %vm596 = vweird.f32 %v511
        %vm597 = vweird.f32 %v590
        %vm598 = vmor %vm596, %vm597
        %v599 = vsel %vm598, %v590, %v595
        %v600 = vrsqrt.pop %v512
        %v601 = vmul.f32 %v600, %v512
        %v602 = vmul.f32 %v601, %v600
        %v603 = vmul.f32 0.5, %v602
        %v604 = vsub.f32 1.5, %v603
        %v605 = vmul.f32 %v600, %v604
        %vm606 = vweird.f32 %v512
        %vm607 = vweird.f32 %v600
        %vm608 = vmor %vm606, %vm607
        %v609 = vsel %vm608, %v600, %v605
        %v610 = vrsqrt.pop %v513
        %v611 = vmul.f32 %v610, %v513
        %v612 = vmul.f32 %v611, %v610
        %v613 = vmul.f32 0.5, %v612
        %v614 = vsub.f32 1.5, %v613
        %v615 = vmul.f32 %v610, %v614
        %vm616 = vweird.f32 %v513
        %vm617 = vweird.f32 %v610
        %vm618 = vmor %vm616, %vm617
        %v619 = vsel %vm618, %v610, %v615
        %v620 = vrsqrt.pop %v514
        %v621 = vmul.f32 %v620, %v514
        %v622 = vmul.f32 %v621, %v620
        %v623 = vmul.f32 0.5, %v622
        %v624 = vsub.f32 1.5, %v623
        %v625 = vmul.f32 %v620, %v624
        %vm626 = vweird.f32 %v514
        %vm627 = vweird.f32 %v620
        %vm628 = vmor %vm626, %vm627
        %v629 = vsel %vm628, %v620, %v625
        %v630 = vrsqrt.pop %v515
        %v631 = vmul.f32 %v630, %v515
        %v632 = vmul.f32 %v631, %v630
        %v633 = vmul.f32 0.5, %v632
        %v634 = vsub.f32 1.5, %v633
        %v635 = vmul.f32 %v630, %v634
        %vm636 = vweird.f32 %v515
        %vm637 = vweird.f32 %v630
        %vm638 = vmor %vm636, %vm637
        %v639 = vsel %vm638, %v630, %v635
        %v640 = vrsqrt.pop %v516
        %v641 = vmul.f32 %v640, %v516
        %v642 = vmul.f32 %v641, %v640
        %v643 = vmul.f32 0.5, %v642
        %v644 = vsub.f32 1.5, %v643
        %v645 = vmul.f32 %v640, %v644
        %vm646 = vweird.f32 %v516
        %vm647 = vweird.f32 %v640
        %vm648 = vmor %vm646, %vm647
        %v649 = vsel %vm648, %v640, %v645
        %v650 = vrsqrt.pop %v517
        %v651 = vmul.f32 %v650, %v517
        %v652 = vmul.f32 %v651, %v650
        %v653 = vmul.f32 0.5, %v652
        %v654 = vsub.f32 1.5, %v653
        %v655 = vmul.f32 %v650, %v654
        %vm656 = vweird.f32 %v517
        %vm657 = vweird.f32 %v650
        %vm658 = vmor %vm656, %vm657
        %v659 = vsel %vm658, %v650, %v655
        %v660 = vrsqrt.pop %v518
        %v661 = vmul.f32 %v660, %v518
        %v662 = vmul.f32 %v661, %v660
        %v663 = vmul.f32 0.5, %v662
        %v664 = vsub.f32 1.5, %v663
        %v665 = vmul.f32 %v660, %v664
        %vm666 = vweird.f32 %v518
        %vm667 = vweird.f32 %v660
        %vm668 = vmor %vm666, %vm667
        %v669 = vsel %vm668, %v660, %v665
        %v670 = vrsqrt.pop %v519
        %v671 = vmul.f32 %v670, %v519
        %v672 = vmul.f32 %v671, %v670
        %v673 = vmul.f32 0.5, %v672
        %v674 = vsub.f32 1.5, %v673
        %v675 = vmul.f32 %v670, %v674
        %vm676 = vweird.f32 %v519
        %vm677 = vweird.f32 %v670
        %vm678 = vmor %vm676, %vm677
        %v679 = vsel %vm678, %v670, %v675
        %v680 = vmul.f32 %v424, %v529
        %v681 = vmul.f32 %v425, %v539
        %v682 = vmul.f32 %v426, %v549
        %v683 = vmul.f32 %v427, %v559
        %v684 = vmul.f32 %v428, %v569
        %v685 = vmul.f32 %v429, %v579
        %v686 = vmul.f32 %v430, %v589
        %v687 = vmul.f32 %v431, %v599
        %v688 = vmul.f32 %v432, %v609
        %v689 = vmul.f32 %v433, %v619
        %v690 = vmul.f32 %v434, %v629
        %v691 = vmul.f32 %v435, %v639
        %v692 = vmul.f32 %v436, %v649
        %v693 = vmul.f32 %v437, %v659
        %v694 = vmul.f32 %v438, %v669
        %v695 = vmul.f32 %v439, %v679
        %v696 = vmul.f32 %v680, %v367
        %v697 = vmul.f32 %v681, %v367
        %v698 = vmul.f32 %v682, %v367
        %v699 = vmul.f32 %v683, %v367
        %v700 = vmul.f32 %v684, %v367
        %v701 = vmul.f32 %v685, %v367
        %v702 = vmul.f32 %v686, %v367
        %v703 = vmul.f32 %v687, %v367
        %v704 = vmul.f32 %v688, %v367
        %v705 = vmul.f32 %v689, %v367
        %v706 = vmul.f32 %v690, %v367
        %v707 = vmul.f32 %v691, %v367
        %v708 = vmul.f32 %v692, %v367
        %v709 = vmul.f32 %v693, %v367
        %v710 = vmul.f32 %v694, %v367
        %v711 = vmul.f32 %v695, %v367
        %v712 = vadd.f32 %v696, %v368
        %v713 = vadd.f32 %v697, %v368
        %v714 = vadd.f32 %v698, %v368
        %v715 = vadd.f32 %v699, %v368
        %v716 = vadd.f32 %v700, %v368
        %v717 = vadd.f32 %v701, %v368
        %v718 = vadd.f32 %v702, %v368
        %v719 = vadd.f32 %v703, %v368
        %v720 = vadd.f32 %v704, %v368
        %v721 = vadd.f32 %v705, %v368
        %v722 = vadd.f32 %v706, %v368
        %v723 = vadd.f32 %v707, %v368
        %v724 = vadd.f32 %v708, %v368
        %v725 = vadd.f32 %v709, %v368
        %v726 = vadd.f32 %v710, %v368
        %v727 = vadd.f32 %v711, %v368
        %v728 = vpack.c.bf16 %v712, %v712
        %v729 = vpack.c.bf16 %v713, %v713
        %v730 = vpack.c.bf16 %v714, %v714
        %v731 = vpack.c.bf16 %v715, %v715
        %v732 = vpack.c.bf16 %v716, %v716
        %v733 = vpack.c.bf16 %v717, %v717
        %v734 = vpack.c.bf16 %v718, %v718
        %v735 = vpack.c.bf16 %v719, %v719
        %v736 = vpack.c.bf16 %v720, %v720
        %v737 = vpack.c.bf16 %v721, %v721
        %v738 = vpack.c.bf16 %v722, %v722
        %v739 = vpack.c.bf16 %v723, %v723
        %v740 = vpack.c.bf16 %v724, %v724
        %v741 = vpack.c.bf16 %v725, %v725
        %v742 = vpack.c.bf16 %v726, %v726
        %v743 = vpack.c.bf16 %v727, %v727
        %v744 = vld [vmem:[#allocation7] sm:$0xff]
        %v745 = vld [vmem:[#allocation7 + $0x28] sm:$0xff]
        %v746 = vld [vmem:[#allocation7 + $0x50] sm:$0xff]
        %v747 = vld [vmem:[#allocation7 + $0x78] sm:$0xff]
        %v748 = vld [vmem:[#allocation7 + $0xa0] sm:$0xff]
        %v749 = vld [vmem:[#allocation7 + $0xc8] sm:$0xff]
        %v750 = vld [vmem:[#allocation7 + $0xf0] sm:$0xff]
        %v751 = vld [vmem:[#allocation7 + $0x118] sm:$0xff]
        %v752 = vld [vmem:[#allocation7 + $0x140] sm:$0xff]
        %v753 = vld [vmem:[#allocation7 + $0x168] sm:$0xff]
        %v754 = vld [vmem:[#allocation7 + $0x190] sm:$0xff]
        %v755 = vld [vmem:[#allocation7 + $0x1b8] sm:$0xff]
        %v756 = vld [vmem:[#allocation7 + $0x1e0] sm:$0xff]
        %v757 = vld [vmem:[#allocation7 + $0x208] sm:$0xff]
        %v758 = vld [vmem:[#allocation7 + $0x230] sm:$0xff]
        %v759 = vld [vmem:[#allocation7 + $0x258] sm:$0xff]
        %s760 = scalar_lea.vmem [#allocation10], 2
        %v761 = vld [vmem:[%s760] ss:$8 sm:$0x3]
        %v763 = vperm.slane %v761, 0
        %v764 = vperm.slane %v761, 1
        %v783 = vunpack.c.l.b16 %v728
        %v784 = vunpack.c.l.b16 %v729
        %v785 = vunpack.c.l.b16 %v730
        %v786 = vunpack.c.l.b16 %v731
        %v787 = vunpack.c.l.b16 %v732
        %v788 = vunpack.c.l.b16 %v733
        %v789 = vunpack.c.l.b16 %v734
        %v790 = vunpack.c.l.b16 %v735
        %v791 = vunpack.c.l.b16 %v736
        %v792 = vunpack.c.l.b16 %v737
        %v793 = vunpack.c.l.b16 %v738
        %v794 = vunpack.c.l.b16 %v739
        %v795 = vunpack.c.l.b16 %v740
        %v796 = vunpack.c.l.b16 %v741
        %v797 = vunpack.c.l.b16 %v742
        %v798 = vunpack.c.l.b16 %v743
        %v799 = vpack.c.b16 %v784, %v783
        %v800 = vpack.c.b16 %v786, %v785
        %v801 = vpack.c.b16 %v788, %v787
        %v802 = vpack.c.b16 %v790, %v789
        %v803 = vpack.c.b16 %v792, %v791
        %v804 = vpack.c.b16 %v794, %v793
        %v805 = vpack.c.b16 %v796, %v795
        %v806 = vpack.c.b16 %v798, %v797
        %v831 = vunpack.c.l.b16 %v744
        %v832 = vunpack.c.h.b16 %v744
        %v833 = vunpack.c.l.b16 %v745
        %v834 = vunpack.c.h.b16 %v745
        %v835 = vunpack.c.l.b16 %v746
        %v836 = vunpack.c.h.b16 %v746
        %v837 = vunpack.c.l.b16 %v747
        %v838 = vunpack.c.h.b16 %v747
        %v839 = vunpack.c.l.b16 %v748
        %v840 = vunpack.c.h.b16 %v748
        %v841 = vunpack.c.l.b16 %v749
        %v842 = vunpack.c.h.b16 %v749
        %v843 = vunpack.c.l.b16 %v750
        %v844 = vunpack.c.h.b16 %v750
        %v845 = vunpack.c.l.b16 %v751
        %v846 = vunpack.c.h.b16 %v751
        %v847 = vunpack.c.l.b16 %v752
        %v848 = vunpack.c.h.b16 %v752
        %v849 = vunpack.c.l.b16 %v753
        %v850 = vunpack.c.h.b16 %v753
        %v851 = vunpack.c.l.b16 %v754
        %v852 = vunpack.c.h.b16 %v754
        %v853 = vunpack.c.l.b16 %v755
        %v854 = vunpack.c.h.b16 %v755
        %v855 = vunpack.c.l.b16 %v756
        %v856 = vunpack.c.h.b16 %v756
        %v857 = vunpack.c.l.b16 %v757
        %v858 = vunpack.c.h.b16 %v757
        %v859 = vunpack.c.l.b16 %v758
        %v860 = vunpack.c.h.b16 %v758
        %v861 = vunpack.c.l.b16 %v759
        %v862 = vunpack.c.h.b16 %v759
        %v863 = vpack.c.b16 %v833, %v831
        %v864 = vpack.c.b16 %v834, %v832
        %v865 = vpack.c.b16 %v837, %v835
        %v866 = vpack.c.b16 %v838, %v836
        %v867 = vpack.c.b16 %v841, %v839
        %v868 = vpack.c.b16 %v842, %v840
        %v869 = vpack.c.b16 %v845, %v843
        %v870 = vpack.c.b16 %v846, %v844
        %v871 = vpack.c.b16 %v849, %v847
        %v872 = vpack.c.b16 %v850, %v848
        %v873 = vpack.c.b16 %v853, %v851
        %v874 = vpack.c.b16 %v854, %v852
        %v875 = vpack.c.b16 %v857, %v855
        %v876 = vpack.c.b16 %v858, %v856
        %v877 = vpack.c.b16 %v861, %v859
        %v878 = vpack.c.b16 %v862, %v860
        %895 = vmatpush.bf16.msra.mxu0 %v877
        %896 = vmatpush.bf16.msra.mxu0 %v875
        %897 = vmatpush.bf16.msra.mxu0 %v873
        %898 = vmatpush.bf16.msra.mxu0 %v871
        %899 = vmatpush.bf16.msra.mxu0 %v869
        %900 = vmatpush.bf16.msra.mxu0 %v867
        %901 = vmatpush.bf16.msra.mxu0 %v865
        %902 = vmatpush.bf16.msra.mxu0 %v863
        %903 = vmatmul.bf16.gmra.mxu0 %v799
        %v904 = vpop.f32.mrf.mxu0
        %v905 = vadd.f32 %v763, %v904
        %v906 = vpop.f32.mrf.mxu0
        %v907 = vadd.f32 %v763, %v906
        %908 = vmatmul.bf16.gmra.mxu0 %v800
        %v909 = vpop.f32.mrf.mxu0
        %v910 = vadd.f32 %v763, %v909
        %v911 = vpop.f32.mrf.mxu0
        %v912 = vadd.f32 %v763, %v911
        %913 = vmatmul.bf16.gmra.mxu0 %v801
        %v914 = vpop.f32.mrf.mxu0
        %v915 = vadd.f32 %v763, %v914
        %v916 = vpop.f32.mrf.mxu0
        %v917 = vadd.f32 %v763, %v916
        %918 = vmatmul.bf16.gmra.mxu0 %v802
        %v919 = vpop.f32.mrf.mxu0
        %v920 = vadd.f32 %v763, %v919
        %v921 = vpop.f32.mrf.mxu0
        %v922 = vadd.f32 %v763, %v921
        %923 = vmatmul.bf16.gmra.mxu0 %v803
        %v924 = vpop.f32.mrf.mxu0
        %v925 = vadd.f32 %v763, %v924
        %v926 = vpop.f32.mrf.mxu0
        %v927 = vadd.f32 %v763, %v926
        %928 = vmatmul.bf16.gmra.mxu0 %v804
        %v929 = vpop.f32.mrf.mxu0
        %v930 = vadd.f32 %v763, %v929
        %v931 = vpop.f32.mrf.mxu0
        %v932 = vadd.f32 %v763, %v931
        %933 = vmatmul.bf16.gmra.mxu0 %v805
        %v934 = vpop.f32.mrf.mxu0
        %v935 = vadd.f32 %v763, %v934
        %v936 = vpop.f32.mrf.mxu0
        %v937 = vadd.f32 %v763, %v936
        %938 = vmatmul.bf16.gmra.mxu0 %v806
        %v939 = vpop.f32.mrf.mxu0
        %v940 = vadd.f32 %v763, %v939
        %v941 = vpop.f32.mrf.mxu0
        %v942 = vadd.f32 %v763, %v941
        %943 = vdwg.mxu0
        %944 = vmatpush.bf16.msra.mxu0 %v878
        %945 = vmatpush.bf16.msra.mxu0 %v876
        %946 = vmatpush.bf16.msra.mxu0 %v874
        %947 = vmatpush.bf16.msra.mxu0 %v872
        %948 = vmatpush.bf16.msra.mxu0 %v870
        %949 = vmatpush.bf16.msra.mxu0 %v868
        %950 = vmatpush.bf16.msra.mxu0 %v866
        %951 = vmatpush.bf16.msra.mxu0 %v864
        %952 = vmatmul.bf16.gmra.mxu0 %v799
        %v953 = vpop.f32.mrf.mxu0
        %v954 = vadd.f32 %v764, %v953
        %v955 = vpop.f32.mrf.mxu0
        %v956 = vadd.f32 %v764, %v955
        %957 = vmatmul.bf16.gmra.mxu0 %v800
        %v958 = vpop.f32.mrf.mxu0
        %v959 = vadd.f32 %v764, %v958
        %v960 = vpop.f32.mrf.mxu0
        %v961 = vadd.f32 %v764, %v960
        %962 = vmatmul.bf16.gmra.mxu0 %v801
        %v963 = vpop.f32.mrf.mxu0
        %v964 = vadd.f32 %v764, %v963
        %v965 = vpop.f32.mrf.mxu0
        %v966 = vadd.f32 %v764, %v965
        %967 = vmatmul.bf16.gmra.mxu0 %v802
        %v968 = vpop.f32.mrf.mxu0
        %v969 = vadd.f32 %v764, %v968
        %v970 = vpop.f32.mrf.mxu0
        %v971 = vadd.f32 %v764, %v970
        %972 = vmatmul.bf16.gmra.mxu0 %v803
        %v973 = vpop.f32.mrf.mxu0
        %v974 = vadd.f32 %v764, %v973
        %v975 = vpop.f32.mrf.mxu0
        %v976 = vadd.f32 %v764, %v975
        %977 = vmatmul.bf16.gmra.mxu0 %v804
        %v978 = vpop.f32.mrf.mxu0
        %v979 = vadd.f32 %v764, %v978
        %v980 = vpop.f32.mrf.mxu0
        %v981 = vadd.f32 %v764, %v980
        %982 = vmatmul.bf16.gmra.mxu0 %v805
        %v983 = vpop.f32.mrf.mxu0
        %v984 = vadd.f32 %v764, %v983
        %v985 = vpop.f32.mrf.mxu0
        %v986 = vadd.f32 %v764, %v985
        %987 = vmatmul.bf16.gmra.mxu0 %v806
        %v988 = vpop.f32.mrf.mxu0
        %v989 = vadd.f32 %v764, %v988
        %v990 = vpop.f32.mrf.mxu0
        %v991 = vadd.f32 %v764, %v990
        %992 = vdwg.mxu0
        %v993 = vld [vmem:[#allocation7 + $0x8] sm:$0xf]
        %v994 = vld [vmem:[#allocation7 + $0x30] sm:$0xf]
        %v995 = vld [vmem:[#allocation7 + $0x58] sm:$0xf]
        %v996 = vld [vmem:[#allocation7 + $0x80] sm:$0xf]
        %v997 = vld [vmem:[#allocation7 + $0xa8] sm:$0xf]
        %v998 = vld [vmem:[#allocation7 + $0xd0] sm:$0xf]
        %v999 = vld [vmem:[#allocation7 + $0xf8] sm:$0xf]
        %v1000 = vld [vmem:[#allocation7 + $0x120] sm:$0xf]
        %v1001 = vld [vmem:[#allocation7 + $0x148] sm:$0xf]
        %v1002 = vld [vmem:[#allocation7 + $0x170] sm:$0xf]
        %v1003 = vld [vmem:[#allocation7 + $0x198] sm:$0xf]
        %v1004 = vld [vmem:[#allocation7 + $0x1c0] sm:$0xf]
        %v1005 = vld [vmem:[#allocation7 + $0x1e8] sm:$0xf]
        %v1006 = vld [vmem:[#allocation7 + $0x210] sm:$0xf]
        %v1007 = vld [vmem:[#allocation7 + $0x238] sm:$0xf]
        %v1008 = vld [vmem:[#allocation7 + $0x260] sm:$0xf]
        %v1009 = vld [vmem:[#allocation10 + $0x3] ss:$0 sm:$0xff]
        %v1010 = vrot.slane %v785, 7
        %vm1011 = vcmask 1041409
        %v1012 = vsel %vm1011, %v1010, %v783
        %v1013 = vrot.slane %v787, 6
        %vm1014 = vcmask 1042434
        %v1015 = vsel %vm1014, %v1013, %v1012
        %v1016 = vrot.slane %v789, 5
        %vm1017 = vcmask 1043459
        %v1018 = vsel %vm1017, %v1016, %v1015
        %v1019 = vrot.slane %v791, 4
        %vm1020 = vcmask 1044484
        %v1021 = vsel %vm1020, %v1019, %v1018
        %v1022 = vrot.slane %v793, 3
        %vm1023 = vcmask 1045509
        %v1024 = vsel %vm1023, %v1022, %v1021
        %v1025 = vrot.slane %v795, 2
        %vm1026 = vcmask 1046534
        %v1027 = vsel %vm1026, %v1025, %v1024
        %v1028 = vrot.slane %v797, 1
        %vm1029 = vcmask 1047559
        %v1030 = vsel %vm1029, %v1028, %v1027
        %v1031 = vpack.c.b16 %v1030, %v1030
        %v1049 = vunpack.c.l.b16 %v993
        %v1050 = vunpack.c.l.b16 %v994
        %v1051 = vunpack.c.l.b16 %v995
        %v1052 = vunpack.c.l.b16 %v996
        %v1053 = vunpack.c.l.b16 %v997
        %v1054 = vunpack.c.l.b16 %v998
        %v1055 = vunpack.c.l.b16 %v999
        %v1056 = vunpack.c.l.b16 %v1000
        %v1057 = vunpack.c.l.b16 %v1001
        %v1058 = vunpack.c.l.b16 %v1002
        %v1059 = vunpack.c.l.b16 %v1003
        %v1060 = vunpack.c.l.b16 %v1004
        %v1061 = vunpack.c.l.b16 %v1005
        %v1062 = vunpack.c.l.b16 %v1006
        %v1063 = vunpack.c.l.b16 %v1007
        %v1064 = vunpack.c.l.b16 %v1008
        %v1065 = vpack.c.b16 %v1050, %v1049
        %v1066 = vpack.c.b16 %v1052, %v1051
        %v1067 = vpack.c.b16 %v1054, %v1053
        %v1068 = vpack.c.b16 %v1056, %v1055
        %v1069 = vpack.c.b16 %v1058, %v1057
        %v1070 = vpack.c.b16 %v1060, %v1059
        %v1071 = vpack.c.b16 %v1062, %v1061
        %v1072 = vpack.c.b16 %v1064, %v1063
        %1081 = vmatpush.bf16.msra.mxu0 %v1072
        %1082 = vmatpush.bf16.msra.mxu0 %v1071
        %1083 = vmatpush.bf16.msra.mxu0 %v1070
        %1084 = vmatpush.bf16.msra.mxu0 %v1069
        %1085 = vmatpush.bf16.msra.mxu0 %v1068
        %1086 = vmatpush.bf16.msra.mxu0 %v1067
        %1087 = vmatpush.bf16.msra.mxu0 %v1066
        %1088 = vmatpush.bf16.msra.mxu0 %v1065
        %1089 = vmatmul.bf16.gmra.mxu0 %v1031
        %v1090 = vpop.f32.mrf.mxu0
        %v1091 = vadd.f32 %v1009, %v1090
        %v1092 = vpop.f32.mrf.mxu0
        %1093 = vdwg.mxu0
        %v1095 = vrot.slane %v1091, 1
        %v1096 = vrot.slane %v1091, 2
        %v1097 = vrot.slane %v1091, 3
        %v1098 = vrot.slane %v1091, 4
        %v1099 = vrot.slane %v1091, 5
        %v1100 = vrot.slane %v1091, 6
        %v1101 = vrot.slane %v1091, 7
        %v1102 = vperm.slane %v1091, 0
        %v1103 = vperm.slane %v1095, 0
        %v1104 = vperm.slane %v1096, 0
        %v1105 = vperm.slane %v1097, 0
        %v1106 = vperm.slane %v1098, 0
        %v1107 = vperm.slane %v1099, 0
        %v1108 = vperm.slane %v1100, 0
        %v1109 = vperm.slane %v1101, 0
        %v1118 = vmul.f32 %v1102, %v905
        %v1119 = vmul.f32 %v1102, %v907
        %v1120 = vmul.f32 %v1103, %v910
        %v1121 = vmul.f32 %v1103, %v912
        %v1122 = vmul.f32 %v1104, %v915
        %v1123 = vmul.f32 %v1104, %v917
        %v1124 = vmul.f32 %v1105, %v920
        %v1125 = vmul.f32 %v1105, %v922
        %v1126 = vmul.f32 %v1106, %v925
        %v1127 = vmul.f32 %v1106, %v927
        %v1128 = vmul.f32 %v1107, %v930
        %v1129 = vmul.f32 %v1107, %v932
        %v1130 = vmul.f32 %v1108, %v935
        %v1131 = vmul.f32 %v1108, %v937
        %v1132 = vmul.f32 %v1109, %v940
        %v1133 = vmul.f32 %v1109, %v942
        %1134 = vadd.xlane.f32.xlu0 %v1118
        %v1135 = vpop.xlane.xlu0 %1134
        %1136 = vadd.xlane.f32.xlu0 %v1119
        %v1137 = vpop.xlane.xlu0 %1136
        %1138 = vadd.xlane.f32.xlu0 %v1120
        %v1139 = vpop.xlane.xlu0 %1138
        %1140 = vadd.xlane.f32.xlu0 %v1121
        %v1141 = vpop.xlane.xlu0 %1140
        %1142 = vadd.xlane.f32.xlu0 %v1122
        %v1143 = vpop.xlane.xlu0 %1142
        %1144 = vadd.xlane.f32.xlu0 %v1123
        %v1145 = vpop.xlane.xlu0 %1144
        %1146 = vadd.xlane.f32.xlu0 %v1124
        %v1147 = vpop.xlane.xlu0 %1146
        %1148 = vadd.xlane.f32.xlu0 %v1125
        %v1149 = vpop.xlane.xlu0 %1148
        %1150 = vadd.xlane.f32.xlu0 %v1126
        %v1151 = vpop.xlane.xlu0 %1150
        %1152 = vadd.xlane.f32.xlu0 %v1127
        %v1153 = vpop.xlane.xlu0 %1152
        %1154 = vadd.xlane.f32.xlu0 %v1128
        %v1155 = vpop.xlane.xlu0 %1154
        %1156 = vadd.xlane.f32.xlu0 %v1129
        %v1157 = vpop.xlane.xlu0 %1156
        %1158 = vadd.xlane.f32.xlu0 %v1130
        %v1159 = vpop.xlane.xlu0 %1158
        %1160 = vadd.xlane.f32.xlu0 %v1131
        %v1161 = vpop.xlane.xlu0 %1160
        %1162 = vadd.xlane.f32.xlu0 %v1132
        %v1163 = vpop.xlane.xlu0 %1162
        %1164 = vadd.xlane.f32.xlu0 %v1133
        %v1165 = vpop.xlane.xlu0 %1164
        %v1166 = vmul.f32 %v1135, 0.088388346
        %v1167 = vmul.f32 %v1137, 0.088388346
        %v1168 = vmul.f32 %v1139, 0.088388346
        %v1169 = vmul.f32 %v1141, 0.088388346
        %v1170 = vmul.f32 %v1143, 0.088388346
        %v1171 = vmul.f32 %v1145, 0.088388346
        %v1172 = vmul.f32 %v1147, 0.088388346
        %v1173 = vmul.f32 %v1149, 0.088388346
        %v1174 = vmul.f32 %v1151, 0.088388346
        %v1175 = vmul.f32 %v1153, 0.088388346
        %v1176 = vmul.f32 %v1155, 0.088388346
        %v1177 = vmul.f32 %v1157, 0.088388346
        %v1178 = vmul.f32 %v1159, 0.088388346
        %v1179 = vmul.f32 %v1161, 0.088388346
        %v1180 = vmul.f32 %v1163, 0.088388346
        %v1181 = vmul.f32 %v1165, 0.088388346
        %v1182 = vld [vmem:[%s286] sm:$0xff]
        %v1183 = vsub.f32 %v1182, 1.0
        %v1184 = vmul.f32 %v1183, 1e+09
        %v1186 = vperm.slane %v1184, 0
        %v1187 = vlaneseq
        %v1188 = vshrl.u32 %v1187, 7
        %1190 = vset.pattern.permute.xlu0 %v1188
        %1191 = vperm.xlu0 %1190, %v1186
        %v1192 = vpop.permute.xlu0 %1191
        %v1193 = vlaneseq
        %v1194 = vshrl.u32 %v1193, 7
        %v1195 = vadd.s32 %v1194, 8
        %1196 = vset.pattern.permute.xlu0 %v1195
        %1197 = vperm.xlu0 %1196, %v1186
        %v1198 = vpop.permute.xlu0 %1197
        %v1199 = vperm.slane %v1184, 1
        %v1200 = vlaneseq
        %v1201 = vshrl.u32 %v1200, 7
        %1203 = vset.pattern.permute.xlu0 %v1201
        %1204 = vperm.xlu0 %1203, %v1199
        %v1205 = vpop.permute.xlu0 %1204
        %v1206 = vlaneseq
        %v1207 = vshrl.u32 %v1206, 7
        %v1208 = vadd.s32 %v1207, 8
        %1209 = vset.pattern.permute.xlu0 %v1208
        %1210 = vperm.xlu0 %1209, %v1199
        %v1211 = vpop.permute.xlu0 %1210
        %v1212 = vperm.slane %v1184, 2
        %v1213 = vlaneseq
        %v1214 = vshrl.u32 %v1213, 7
        %1216 = vset.pattern.permute.xlu0 %v1214
        %1217 = vperm.xlu0 %1216, %v1212
        %v1218 = vpop.permute.xlu0 %1217
        %v1219 = vlaneseq
        %v1220 = vshrl.u32 %v1219, 7
        %v1221 = vadd.s32 %v1220, 8
        %1222 = vset.pattern.permute.xlu0 %v1221
        %1223 = vperm.xlu0 %1222, %v1212
        %v1224 = vpop.permute.xlu0 %1223
        %v1225 = vperm.slane %v1184, 3
        %v1226 = vlaneseq
        %v1227 = vshrl.u32 %v1226, 7
        %1229 = vset.pattern.permute.xlu0 %v1227
        %1230 = vperm.xlu0 %1229, %v1225
        %v1231 = vpop.permute.xlu0 %1230
        %v1232 = vlaneseq
        %v1233 = vshrl.u32 %v1232, 7
        %v1234 = vadd.s32 %v1233, 8
        %1235 = vset.pattern.permute.xlu0 %v1234
        %1236 = vperm.xlu0 %1235, %v1225
        %v1237 = vpop.permute.xlu0 %1236
        %v1238 = vperm.slane %v1184, 4
        %v1239 = vlaneseq
        %v1240 = vshrl.u32 %v1239, 7
        %1242 = vset.pattern.permute.xlu0 %v1240
        %1243 = vperm.xlu0 %1242, %v1238
        %v1244 = vpop.permute.xlu0 %1243
        %v1245 = vlaneseq
        %v1246 = vshrl.u32 %v1245, 7
        %v1247 = vadd.s32 %v1246, 8
        %1248 = vset.pattern.permute.xlu0 %v1247
        %1249 = vperm.xlu0 %1248, %v1238
        %v1250 = vpop.permute.xlu0 %1249
        %v1251 = vperm.slane %v1184, 5
        %v1252 = vlaneseq
        %v1253 = vshrl.u32 %v1252, 7
        %1255 = vset.pattern.permute.xlu0 %v1253
        %1256 = vperm.xlu0 %1255, %v1251
        %v1257 = vpop.permute.xlu0 %1256
        %v1258 = vlaneseq
        %v1259 = vshrl.u32 %v1258, 7
        %v1260 = vadd.s32 %v1259, 8
        %1261 = vset.pattern.permute.xlu0 %v1260
        %1262 = vperm.xlu0 %1261, %v1251
        %v1263 = vpop.permute.xlu0 %1262
        %v1264 = vperm.slane %v1184, 6
        %v1265 = vlaneseq
        %v1266 = vshrl.u32 %v1265, 7
        %1268 = vset.pattern.permute.xlu0 %v1266
        %1269 = vperm.xlu0 %1268, %v1264
        %v1270 = vpop.permute.xlu0 %1269
        %v1271 = vlaneseq
        %v1272 = vshrl.u32 %v1271, 7
        %v1273 = vadd.s32 %v1272, 8
        %1274 = vset.pattern.permute.xlu0 %v1273
        %1275 = vperm.xlu0 %1274, %v1264
        %v1276 = vpop.permute.xlu0 %1275
        %v1277 = vperm.slane %v1184, 7
        %v1278 = vlaneseq
        %v1279 = vshrl.u32 %v1278, 7
        %1281 = vset.pattern.permute.xlu0 %v1279
        %1282 = vperm.xlu0 %1281, %v1277
        %v1283 = vpop.permute.xlu0 %1282
        %v1284 = vlaneseq
        %v1285 = vshrl.u32 %v1284, 7
        %v1286 = vadd.s32 %v1285, 8
        %1287 = vset.pattern.permute.xlu0 %v1286
        %1288 = vperm.xlu0 %1287, %v1277
        %v1289 = vpop.permute.xlu0 %1288
        %v1306 = vadd.f32 %v1166, %v1192
        %v1307 = vadd.f32 %v1167, %v1198
        %v1308 = vadd.f32 %v1168, %v1205
        %v1309 = vadd.f32 %v1169, %v1211
        %v1310 = vadd.f32 %v1170, %v1218
        %v1311 = vadd.f32 %v1171, %v1224
        %v1312 = vadd.f32 %v1172, %v1231
        %v1313 = vadd.f32 %v1173, %v1237
        %v1314 = vadd.f32 %v1174, %v1244
        %v1315 = vadd.f32 %v1175, %v1250
        %v1316 = vadd.f32 %v1176, %v1257
        %v1317 = vadd.f32 %v1177, %v1263
        %v1318 = vadd.f32 %v1178, %v1270
        %v1319 = vadd.f32 %v1179, %v1276
        %v1320 = vadd.f32 %v1180, %v1283
        %v1321 = vadd.f32 %v1181, %v1289
        %1338 = vset.pattern.permute.xlu0 0
        %1339 = vperm.xlu0 %1338, %v1306
        %v1340 = vpop.permute.xlu0 %1339
        %1341 = vset.pattern.permute.xlu0 0
        %1342 = vperm.xlu0 %1341, %v1307
        %v1343 = vpop.permute.xlu0 %1342
        %1344 = vset.pattern.permute.xlu0 0
        %1345 = vperm.xlu0 %1344, %v1308
        %v1346 = vpop.permute.xlu0 %1345
        %1347 = vset.pattern.permute.xlu0 0
        %1348 = vperm.xlu0 %1347, %v1309
        %v1349 = vpop.permute.xlu0 %1348
        %1350 = vset.pattern.permute.xlu0 0
        %1351 = vperm.xlu0 %1350, %v1310
        %v1352 = vpop.permute.xlu0 %1351
        %1353 = vset.pattern.permute.xlu0 0
        %1354 = vperm.xlu0 %1353, %v1311
        %v1355 = vpop.permute.xlu0 %1354
        %1356 = vset.pattern.permute.xlu0 0
        %1357 = vperm.xlu0 %1356, %v1312
        %v1358 = vpop.permute.xlu0 %1357
        %1359 = vset.pattern.permute.xlu0 0
        %1360 = vperm.xlu0 %1359, %v1313
        %v1361 = vpop.permute.xlu0 %1360
        %1362 = vset.pattern.permute.xlu0 0
        %1363 = vperm.xlu0 %1362, %v1314
        %v1364 = vpop.permute.xlu0 %1363
        %1365 = vset.pattern.permute.xlu0 0
        %1366 = vperm.xlu0 %1365, %v1315
        %v1367 = vpop.permute.xlu0 %1366
        %1368 = vset.pattern.permute.xlu0 0
        %1369 = vperm.xlu0 %1368, %v1316
        %v1370 = vpop.permute.xlu0 %1369
        %1371 = vset.pattern.permute.xlu0 0
        %1372 = vperm.xlu0 %1371, %v1317
        %v1373 = vpop.permute.xlu0 %1372
        %1374 = vset.pattern.permute.xlu0 0
        %1375 = vperm.xlu0 %1374, %v1318
        %v1376 = vpop.permute.xlu0 %1375
        %1377 = vset.pattern.permute.xlu0 0
        %1378 = vperm.xlu0 %1377, %v1319
        %v1379 = vpop.permute.xlu0 %1378
        %1380 = vset.pattern.permute.xlu0 0
        %1381 = vperm.xlu0 %1380, %v1320
        %v1382 = vpop.permute.xlu0 %1381
        %1383 = vset.pattern.permute.xlu0 0
        %1384 = vperm.xlu0 %1383, %v1321
        %v1385 = vpop.permute.xlu0 %1384
        %v1386 = vlaneseq
        %v1387 = vand.u32 %v1386, 127
        %v1388 = vperm.slane %v1340, %v1387
        %v1389 = vadd.s32 %v1387, 4294967288
        %v1390 = vperm.slane %v1343, %v1389
        %vm1391 = vcmask 130112
        %v1392 = vsel %vm1391, %v1390, %v1388
        %v1393 = vperm.slane %v1346, %v1387
        %v1394 = vperm.slane %v1349, %v1389
        %v1395 = vsel %vm1391, %v1394, %v1393
        %v1396 = vperm.slane %v1352, %v1387
        %v1397 = vperm.slane %v1355, %v1389
        %v1398 = vsel %vm1391, %v1397, %v1396
        %v1399 = vperm.slane %v1358, %v1387
        %v1400 = vperm.slane %v1361, %v1389
        %v1401 = vsel %vm1391, %v1400, %v1399
        %v1402 = vperm.slane %v1364, %v1387
        %v1403 = vperm.slane %v1367, %v1389
        %v1404 = vsel %vm1391, %v1403, %v1402
        %v1405 = vperm.slane %v1370, %v1387
        %v1406 = vperm.slane %v1373, %v1389
        %v1407 = vsel %vm1391, %v1406, %v1405
        %v1408 = vperm.slane %v1376, %v1387
        %v1409 = vperm.slane %v1379, %v1389
        %v1410 = vsel %vm1391, %v1409, %v1408
        %v1411 = vperm.slane %v1382, %v1387
        %v1412 = vperm.slane %v1385, %v1389
        %v1413 = vsel %vm1391, %v1412, %v1411
        %v1414 = vsel %vm1011, %v1395, %v1392
        %v1415 = vsel %vm1014, %v1398, %v1414
        %v1416 = vsel %vm1017, %v1401, %v1415
        %v1417 = vsel %vm1020, %v1404, %v1416
        %v1418 = vsel %vm1023, %v1407, %v1417
        %v1419 = vsel %vm1026, %v1410, %v1418
        %v1420 = vsel %vm1029, %v1413, %v1419
        %vm1422 = vcmask 130048
        %v1423 = vsel %vm1422, %v1420, -inf
        %1424 = vmax.xlane.f32.xlu0 %v1423
        %v1425 = vpop.xlane.xlu0 %1424
        %v1427 = vperm.slane %v1425, 0
        %v1428 = vperm.slane %v1425, 1
        %v1429 = vperm.slane %v1425, 2
        %v1430 = vperm.slane %v1425, 3
        %v1431 = vperm.slane %v1425, 4
        %v1432 = vperm.slane %v1425, 5
        %v1433 = vperm.slane %v1425, 6
        %v1434 = vperm.slane %v1425, 7
        %v1443 = vsub.f32 %v1306, %v1427
        %v1444 = vsub.f32 %v1307, %v1427
        %v1445 = vsub.f32 %v1308, %v1428
        %v1446 = vsub.f32 %v1309, %v1428
        %v1447 = vsub.f32 %v1310, %v1429
        %v1448 = vsub.f32 %v1311, %v1429
        %v1449 = vsub.f32 %v1312, %v1430
        %v1450 = vsub.f32 %v1313, %v1430
        %v1451 = vsub.f32 %v1314, %v1431
        %v1452 = vsub.f32 %v1315, %v1431
        %v1453 = vsub.f32 %v1316, %v1432
        %v1454 = vsub.f32 %v1317, %v1432
        %v1455 = vsub.f32 %v1318, %v1433
        %v1456 = vsub.f32 %v1319, %v1433
        %v1457 = vsub.f32 %v1320, %v1434
        %v1458 = vsub.f32 %v1321, %v1434
        %v1459 = vmul.f32 %v1443, 1.442695
        %v1460 = vpow.pop %v1459
        %v1461 = vmul.f32 %v1444, 1.442695
        %v1462 = vpow.pop %v1461
        %v1463 = vmul.f32 %v1445, 1.442695
        %v1464 = vpow.pop %v1463
        %v1465 = vmul.f32 %v1446, 1.442695
        %v1466 = vpow.pop %v1465
        %v1467 = vmul.f32 %v1447, 1.442695
        %v1468 = vpow.pop %v1467
        %v1469 = vmul.f32 %v1448, 1.442695
        %v1470 = vpow.pop %v1469
        %v1471 = vmul.f32 %v1449, 1.442695
        %v1472 = vpow.pop %v1471
        %v1473 = vmul.f32 %v1450, 1.442695
        %v1474 = vpow.pop %v1473
        %v1475 = vmul.f32 %v1451, 1.442695
        %v1476 = vpow.pop %v1475
        %v1477 = vmul.f32 %v1452, 1.442695
        %v1478 = vpow.pop %v1477
        %v1479 = vmul.f32 %v1453, 1.442695
        %v1480 = vpow.pop %v1479
        %v1481 = vmul.f32 %v1454, 1.442695
        %v1482 = vpow.pop %v1481
        %v1483 = vmul.f32 %v1455, 1.442695
        %v1484 = vpow.pop %v1483
        %v1485 = vmul.f32 %v1456, 1.442695
        %v1486 = vpow.pop %v1485
        %v1487 = vmul.f32 %v1457, 1.442695
        %v1488 = vpow.pop %v1487
        %v1489 = vmul.f32 %v1458, 1.442695
        %v1490 = vpow.pop %v1489
        %1507 = vset.pattern.permute.xlu0 0
        %1508 = vperm.xlu0 %1507, %v1460
        %v1509 = vpop.permute.xlu0 %1508
        %1510 = vset.pattern.permute.xlu0 0
        %1511 = vperm.xlu0 %1510, %v1462
        %v1512 = vpop.permute.xlu0 %1511
        %1513 = vset.pattern.permute.xlu0 0
        %1514 = vperm.xlu0 %1513, %v1464
        %v1515 = vpop.permute.xlu0 %1514
        %1516 = vset.pattern.permute.xlu0 0
        %1517 = vperm.xlu0 %1516, %v1466
        %v1518 = vpop.permute.xlu0 %1517
        %1519 = vset.pattern.permute.xlu0 0
        %1520 = vperm.xlu0 %1519, %v1468
        %v1521 = vpop.permute.xlu0 %1520
        %1522 = vset.pattern.permute.xlu0 0
        %1523 = vperm.xlu0 %1522, %v1470
        %v1524 = vpop.permute.xlu0 %1523
        %1525 = vset.pattern.permute.xlu0 0
        %1526 = vperm.xlu0 %1525, %v1472
        %v1527 = vpop.permute.xlu0 %1526
        %1528 = vset.pattern.permute.xlu0 0
        %1529 = vperm.xlu0 %1528, %v1474
        %v1530 = vpop.permute.xlu0 %1529
        %1531 = vset.pattern.permute.xlu0 0
        %1532 = vperm.xlu0 %1531, %v1476
        %v1533 = vpop.permute.xlu0 %1532
        %1534 = vset.pattern.permute.xlu0 0
        %1535 = vperm.xlu0 %1534, %v1478
        %v1536 = vpop.permute.xlu0 %1535
        %1537 = vset.pattern.permute.xlu0 0
        %1538 = vperm.xlu0 %1537, %v1480
        %v1539 = vpop.permute.xlu0 %1538
        %1540 = vset.pattern.permute.xlu0 0
        %1541 = vperm.xlu0 %1540, %v1482
        %v1542 = vpop.permute.xlu0 %1541
        %1543 = vset.pattern.permute.xlu0 0
        %1544 = vperm.xlu0 %1543, %v1484
        %v1545 = vpop.permute.xlu0 %1544
        %1546 = vset.pattern.permute.xlu0 0
        %1547 = vperm.xlu0 %1546, %v1486
        %v1548 = vpop.permute.xlu0 %1547
        %1549 = vset.pattern.permute.xlu0 0
        %1550 = vperm.xlu0 %1549, %v1488
        %v1551 = vpop.permute.xlu0 %1550
        %1552 = vset.pattern.permute.xlu0 0
        %1553 = vperm.xlu0 %1552, %v1490
        %v1554 = vpop.permute.xlu0 %1553
        %v1555 = vperm.slane %v1509, %v1387
        %v1556 = vperm.slane %v1512, %v1389
        %v1557 = vsel %vm1391, %v1556, %v1555
        %v1558 = vperm.slane %v1515, %v1387
        %v1559 = vperm.slane %v1518, %v1389
        %v1560 = vsel %vm1391, %v1559, %v1558
        %v1561 = vperm.slane %v1521, %v1387
        %v1562 = vperm.slane %v1524, %v1389
        %v1563 = vsel %vm1391, %v1562, %v1561
        %v1564 = vperm.slane %v1527, %v1387
        %v1565 = vperm.slane %v1530, %v1389
        %v1566 = vsel %vm1391, %v1565, %v1564
        %v1567 = vperm.slane %v1533, %v1387
        %v1568 = vperm.slane %v1536, %v1389
        %v1569 = vsel %vm1391, %v1568, %v1567
        %v1570 = vperm.slane %v1539, %v1387
        %v1571 = vperm.slane %v1542, %v1389
        %v1572 = vsel %vm1391, %v1571, %v1570
        %v1573 = vperm.slane %v1545, %v1387
        %v1574 = vperm.slane %v1548, %v1389
        %v1575 = vsel %vm1391, %v1574, %v1573
        %v1576 = vperm.slane %v1551, %v1387
        %v1577 = vperm.slane %v1554, %v1389
        %v1578 = vsel %vm1391, %v1577, %v1576
        %v1579 = vsel %vm1011, %v1560, %v1557
        %v1580 = vsel %vm1014, %v1563, %v1579
        %v1581 = vsel %vm1017, %v1566, %v1580
        %v1582 = vsel %vm1020, %v1569, %v1581
        %v1583 = vsel %vm1023, %v1572, %v1582
        %v1584 = vsel %vm1026, %v1575, %v1583
        %v1585 = vsel %vm1029, %v1578, %v1584
        %v1587 = vsel %vm1422, %v1585, 0.0
        %1588 = vadd.xlane.f32.xlu0 %v1587
        %v1589 = vpop.xlane.xlu0 %1588
        %v1591 = vperm.slane %v1589, 0
        %v1592 = vperm.slane %v1589, 1
        %v1593 = vperm.slane %v1589, 2
        %v1594 = vperm.slane %v1589, 3
        %v1595 = vperm.slane %v1589, 4
        %v1596 = vperm.slane %v1589, 5
        %v1597 = vperm.slane %v1589, 6
        %v1598 = vperm.slane %v1589, 7
        %v1607 = vrcp.pop %v1591
        %v1608 = vmul.f32 %v1591, %v1607
        %v1609 = vsub.f32 1.0, %v1608
        %v1610 = vmul.f32 %v1607, %v1609
        %v1611 = vadd.f32 %v1607, %v1610
        %vm1612 = vweird.f32 %v1591
        %vm1613 = vweird.f32 %v1607
        %vm1614 = vmor %vm1612, %vm1613
        %v1615 = vsel %vm1614, %v1607, %v1611
        %v1616 = vand.u32 2147483647, %v1591
        %vm1617 = vcmp.eq.f32.partialorder %v1616, 8.507059e+37
        %v1618 = vand.u32 %v1591, 2147483648
        %v1619 = vor.u32 1.1754944e-38, %v1618
        %v1620 = vsel %vm1617, %v1619, %v1615
        %v1621 = vmul.f32 %v1460, %v1620
        %v1622 = vmul.f32 %v1462, %v1620
        %v1623 = vrcp.pop %v1592
        %v1624 = vmul.f32 %v1592, %v1623
        %v1625 = vsub.f32 1.0, %v1624
        %v1626 = vmul.f32 %v1623, %v1625
        %v1627 = vadd.f32 %v1623, %v1626
        %vm1628 = vweird.f32 %v1592
        %vm1629 = vweird.f32 %v1623
        %vm1630 = vmor %vm1628, %vm1629
        %v1631 = vsel %vm1630, %v1623, %v1627
        %v1632 = vand.u32 2147483647, %v1592
        %vm1633 = vcmp.eq.f32.partialorder %v1632, 8.507059e+37
        %v1634 = vand.u32 %v1592, 2147483648
        %v1635 = vor.u32 1.1754944e-38, %v1634
        %v1636 = vsel %vm1633, %v1635, %v1631
        %v1637 = vmul.f32 %v1464, %v1636
        %v1638 = vmul.f32 %v1466, %v1636
        %v1639 = vrcp.pop %v1593
        %v1640 = vmul.f32 %v1593, %v1639
        %v1641 = vsub.f32 1.0, %v1640
        %v1642 = vmul.f32 %v1639, %v1641
        %v1643 = vadd.f32 %v1639, %v1642
        %vm1644 = vweird.f32 %v1593
        %vm1645 = vweird.f32 %v1639
        %vm1646 = vmor %vm1644, %vm1645
        %v1647 = vsel %vm1646, %v1639, %v1643
        %v1648 = vand.u32 2147483647, %v1593
        %vm1649 = vcmp.eq.f32.partialorder %v1648, 8.507059e+37
        %v1650 = vand.u32 %v1593, 2147483648
        %v1651 = vor.u32 1.1754944e-38, %v1650
        %v1652 = vsel %vm1649, %v1651, %v1647
        %v1653 = vmul.f32 %v1468, %v1652
        %v1654 = vmul.f32 %v1470, %v1652
        %v1655 = vrcp.pop %v1594
        %v1656 = vmul.f32 %v1594, %v1655
        %v1657 = vsub.f32 1.0, %v1656
        %v1658 = vmul.f32 %v1655, %v1657
        %v1659 = vadd.f32 %v1655, %v1658
        %vm1660 = vweird.f32 %v1594
        %vm1661 = vweird.f32 %v1655
        %vm1662 = vmor %vm1660, %vm1661
        %v1663 = vsel %vm1662, %v1655, %v1659
        %v1664 = vand.u32 2147483647, %v1594
        %vm1665 = vcmp.eq.f32.partialorder %v1664, 8.507059e+37
        %v1666 = vand.u32 %v1594, 2147483648
        %v1667 = vor.u32 1.1754944e-38, %v1666
        %v1668 = vsel %vm1665, %v1667, %v1663
        %v1669 = vmul.f32 %v1472, %v1668
        %v1670 = vmul.f32 %v1474, %v1668
        %v1671 = vrcp.pop %v1595
        %v1672 = vmul.f32 %v1595, %v1671
        %v1673 = vsub.f32 1.0, %v1672
        %v1674 = vmul.f32 %v1671, %v1673
        %v1675 = vadd.f32 %v1671, %v1674
        %vm1676 = vweird.f32 %v1595
        %vm1677 = vweird.f32 %v1671
        %vm1678 = vmor %vm1676, %vm1677
        %v1679 = vsel %vm1678, %v1671, %v1675
        %v1680 = vand.u32 2147483647, %v1595
        %vm1681 = vcmp.eq.f32.partialorder %v1680, 8.507059e+37
        %v1682 = vand.u32 %v1595, 2147483648
        %v1683 = vor.u32 1.1754944e-38, %v1682
        %v1684 = vsel %vm1681, %v1683, %v1679
        %v1685 = vmul.f32 %v1476, %v1684
        %v1686 = vmul.f32 %v1478, %v1684
        %v1687 = vrcp.pop %v1596
        %v1688 = vmul.f32 %v1596, %v1687
        %v1689 = vsub.f32 1.0, %v1688
        %v1690 = vmul.f32 %v1687, %v1689
        %v1691 = vadd.f32 %v1687, %v1690
        %vm1692 = vweird.f32 %v1596
        %vm1693 = vweird.f32 %v1687
        %vm1694 = vmor %vm1692, %vm1693
        %v1695 = vsel %vm1694, %v1687, %v1691
        %v1696 = vand.u32 2147483647, %v1596
        %vm1697 = vcmp.eq.f32.partialorder %v1696, 8.507059e+37
        %v1698 = vand.u32 %v1596, 2147483648
        %v1699 = vor.u32 1.1754944e-38, %v1698
        %v1700 = vsel %vm1697, %v1699, %v1695
        %v1701 = vmul.f32 %v1480, %v1700
        %v1702 = vmul.f32 %v1482, %v1700
        %v1703 = vrcp.pop %v1597
        %v1704 = vmul.f32 %v1597, %v1703
        %v1705 = vsub.f32 1.0, %v1704
        %v1706 = vmul.f32 %v1703, %v1705
        %v1707 = vadd.f32 %v1703, %v1706
        %vm1708 = vweird.f32 %v1597
        %vm1709 = vweird.f32 %v1703
        %vm1710 = vmor %vm1708, %vm1709
        %v1711 = vsel %vm1710, %v1703, %v1707
        %v1712 = vand.u32 2147483647, %v1597
        %vm1713 = vcmp.eq.f32.partialorder %v1712, 8.507059e+37
        %v1714 = vand.u32 %v1597, 2147483648
        %v1715 = vor.u32 1.1754944e-38, %v1714
        %v1716 = vsel %vm1713, %v1715, %v1711
        %v1717 = vmul.f32 %v1484, %v1716
        %v1718 = vmul.f32 %v1486, %v1716
        %v1719 = vrcp.pop %v1598
        %v1720 = vmul.f32 %v1598, %v1719
        %v1721 = vsub.f32 1.0, %v1720
        %v1722 = vmul.f32 %v1719, %v1721
        %v1723 = vadd.f32 %v1719, %v1722
        %vm1724 = vweird.f32 %v1598
        %vm1725 = vweird.f32 %v1719
        %vm1726 = vmor %vm1724, %vm1725
        %v1727 = vsel %vm1726, %v1719, %v1723
        %v1728 = vand.u32 2147483647, %v1598
        %vm1729 = vcmp.eq.f32.partialorder %v1728, 8.507059e+37
        %v1730 = vand.u32 %v1598, 2147483648
        %v1731 = vor.u32 1.1754944e-38, %v1730
        %v1732 = vsel %vm1729, %v1731, %v1727
        %v1733 = vmul.f32 %v1488, %v1732
        %v1734 = vmul.f32 %v1490, %v1732
        %1736 = vset.pattern.permute.xlu0 0
        %1737 = vperm.xlu0 %1736, %v1621
        %v1738 = vpop.permute.xlu0 %1737
        %1741 = vset.pattern.permute.xlu0 0
        %1742 = vperm.xlu0 %1741, %v1622
        %v1743 = vpop.permute.xlu0 %1742
        %1746 = vset.pattern.permute.xlu0 0
        %1747 = vperm.xlu0 %1746, %v1637
        %v1748 = vpop.permute.xlu0 %1747
        %1751 = vset.pattern.permute.xlu0 0
        %1752 = vperm.xlu0 %1751, %v1638
        %v1753 = vpop.permute.xlu0 %1752
        %1756 = vset.pattern.permute.xlu0 0
        %1757 = vperm.xlu0 %1756, %v1653
        %v1758 = vpop.permute.xlu0 %1757
        %1761 = vset.pattern.permute.xlu0 0
        %1762 = vperm.xlu0 %1761, %v1654
        %v1763 = vpop.permute.xlu0 %1762
        %1766 = vset.pattern.permute.xlu0 0
        %1767 = vperm.xlu0 %1766, %v1669
        %v1768 = vpop.permute.xlu0 %1767
        %1771 = vset.pattern.permute.xlu0 0
        %1772 = vperm.xlu0 %1771, %v1670
        %v1773 = vpop.permute.xlu0 %1772
        %1776 = vset.pattern.permute.xlu0 0
        %1777 = vperm.xlu0 %1776, %v1685
        %v1778 = vpop.permute.xlu0 %1777
        %1781 = vset.pattern.permute.xlu0 0
        %1782 = vperm.xlu0 %1781, %v1686
        %v1783 = vpop.permute.xlu0 %1782
        %1786 = vset.pattern.permute.xlu0 0
        %1787 = vperm.xlu0 %1786, %v1701
        %v1788 = vpop.permute.xlu0 %1787
        %1791 = vset.pattern.permute.xlu0 0
        %1792 = vperm.xlu0 %1791, %v1702
        %v1793 = vpop.permute.xlu0 %1792
        %1796 = vset.pattern.permute.xlu0 0
        %1797 = vperm.xlu0 %1796, %v1717
        %v1798 = vpop.permute.xlu0 %1797
        %1801 = vset.pattern.permute.xlu0 0
        %1802 = vperm.xlu0 %1801, %v1718
        %v1803 = vpop.permute.xlu0 %1802
        %1806 = vset.pattern.permute.xlu0 0
        %1807 = vperm.xlu0 %1806, %v1733
        %v1808 = vpop.permute.xlu0 %1807
        %1811 = vset.pattern.permute.xlu0 0
        %1812 = vperm.xlu0 %1811, %v1734
        %v1813 = vpop.permute.xlu0 %1812
        %v1815 = vmul.f32 %v1738, %v954
        %v1816 = vmul.f32 %v1743, %v956
        %v1817 = vmul.f32 %v1748, %v959
        %v1818 = vmul.f32 %v1753, %v961
        %v1819 = vmul.f32 %v1758, %v964
        %v1820 = vmul.f32 %v1763, %v966
        %v1821 = vmul.f32 %v1768, %v969
        %v1822 = vmul.f32 %v1773, %v971
        %v1823 = vmul.f32 %v1778, %v974
        %v1824 = vmul.f32 %v1783, %v976
        %v1825 = vmul.f32 %v1788, %v979
        %v1826 = vmul.f32 %v1793, %v981
        %v1827 = vmul.f32 %v1798, %v984
        %v1828 = vmul.f32 %v1803, %v986
        %v1829 = vmul.f32 %v1808, %v989
        %v1830 = vmul.f32 %v1813, %v991
        %v1831 = vadd.f32 %v1815, %v1816
        %v1832 = vrot.slane %v1831, 4
        %v1833 = vadd.f32 %v1831, %v1832
        %v1834 = vrot.slane %v1833, 2
        %v1835 = vadd.f32 %v1833, %v1834
        %v1836 = vrot.slane %v1835, 1
        %v1837 = vadd.f32 %v1835, %v1836
        %v1838 = vadd.f32 %v1817, %v1818
        %v1839 = vrot.slane %v1838, 4
        %v1840 = vadd.f32 %v1838, %v1839
        %v1841 = vrot.slane %v1840, 2
        %v1842 = vadd.f32 %v1840, %v1841
        %v1843 = vrot.slane %v1842, 1
        %v1844 = vadd.f32 %v1842, %v1843
        %v1845 = vadd.f32 %v1819, %v1820
        %v1846 = vrot.slane %v1845, 4
        %v1847 = vadd.f32 %v1845, %v1846
        %v1848 = vrot.slane %v1847, 2
        %v1849 = vadd.f32 %v1847, %v1848
        %v1850 = vrot.slane %v1849, 1
        %v1851 = vadd.f32 %v1849, %v1850
        %v1852 = vadd.f32 %v1821, %v1822
        %v1853 = vrot.slane %v1852, 4
        %v1854 = vadd.f32 %v1852, %v1853
        %v1855 = vrot.slane %v1854, 2
        %v1856 = vadd.f32 %v1854, %v1855
        %v1857 = vrot.slane %v1856, 1
        %v1858 = vadd.f32 %v1856, %v1857
        %v1859 = vadd.f32 %v1823, %v1824
        %v1860 = vrot.slane %v1859, 4
        %v1861 = vadd.f32 %v1859, %v1860
        %v1862 = vrot.slane %v1861, 2
        %v1863 = vadd.f32 %v1861, %v1862
        %v1864 = vrot.slane %v1863, 1
        %v1865 = vadd.f32 %v1863, %v1864
        %v1866 = vadd.f32 %v1825, %v1826
        %v1867 = vrot.slane %v1866, 4
        %v1868 = vadd.f32 %v1866, %v1867
        %v1869 = vrot.slane %v1868, 2
        %v1870 = vadd.f32 %v1868, %v1869
        %v1871 = vrot.slane %v1870, 1
        %v1872 = vadd.f32 %v1870, %v1871
        %v1873 = vadd.f32 %v1827, %v1828
        %v1874 = vrot.slane %v1873, 4
        %v1875 = vadd.f32 %v1873, %v1874
        %v1876 = vrot.slane %v1875, 2
        %v1877 = vadd.f32 %v1875, %v1876
        %v1878 = vrot.slane %v1877, 1
        %v1879 = vadd.f32 %v1877, %v1878
        %v1880 = vadd.f32 %v1829, %v1830
        %v1881 = vrot.slane %v1880, 4
        %v1882 = vadd.f32 %v1880, %v1881
        %v1883 = vrot.slane %v1882, 2
        %v1884 = vadd.f32 %v1882, %v1883
        %v1885 = vrot.slane %v1884, 1
        %v1886 = vadd.f32 %v1884, %v1885
        %v1887 = vpack.c.bf16 %v1837, %v1837
        %v1888 = vpack.c.bf16 %v1844, %v1844
        %v1889 = vpack.c.bf16 %v1851, %v1851
        %v1890 = vpack.c.bf16 %v1858, %v1858
        %v1891 = vpack.c.bf16 %v1865, %v1865
        %v1892 = vpack.c.bf16 %v1872, %v1872
        %v1893 = vpack.c.bf16 %v1879, %v1879
        %v1894 = vpack.c.bf16 %v1886, %v1886
        %v1895 = vld [vmem:[#allocation7 + $0xc] sm:$0xf]
        %v1896 = vld [vmem:[#allocation7 + $0x34] sm:$0xf]
        %v1897 = vld [vmem:[#allocation7 + $0x5c] sm:$0xf]
        %v1898 = vld [vmem:[#allocation7 + $0x84] sm:$0xf]
        %v1899 = vld [vmem:[#allocation7 + $0xac] sm:$0xf]
        %v1900 = vld [vmem:[#allocation7 + $0xd4] sm:$0xf]
        %v1901 = vld [vmem:[#allocation7 + $0xfc] sm:$0xf]
        %v1902 = vld [vmem:[#allocation7 + $0x124] sm:$0xf]
        %v1903 = vld [vmem:[#allocation7 + $0x14c] sm:$0xf]
        %v1904 = vld [vmem:[#allocation7 + $0x174] sm:$0xf]
        %v1905 = vld [vmem:[#allocation7 + $0x19c] sm:$0xf]
        %v1906 = vld [vmem:[#allocation7 + $0x1c4] sm:$0xf]
        %v1907 = vld [vmem:[#allocation7 + $0x1ec] sm:$0xf]
        %v1908 = vld [vmem:[#allocation7 + $0x214] sm:$0xf]
        %v1909 = vld [vmem:[#allocation7 + $0x23c] sm:$0xf]
        %v1910 = vld [vmem:[#allocation7 + $0x264] sm:$0xf]
        %v1911 = vld [vmem:[#allocation10 + $0x4] ss:$0 sm:$0xff]
        %v1920 = vunpack.c.l.b16 %v1887
        %v1921 = vunpack.c.l.b16 %v1888
        %v1922 = vunpack.c.l.b16 %v1889
        %v1923 = vunpack.c.l.b16 %v1890
        %v1924 = vunpack.c.l.b16 %v1891
        %v1925 = vunpack.c.l.b16 %v1892
        %v1926 = vunpack.c.l.b16 %v1893
        %v1927 = vunpack.c.l.b16 %v1894
        %v1928 = vsel %vm1011, %v1921, %v1920
        %v1929 = vsel %vm1014, %v1922, %v1928
        %v1930 = vsel %vm1017, %v1923, %v1929
        %v1931 = vsel %vm1020, %v1924, %v1930
        %v1932 = vsel %vm1023, %v1925, %v1931
        %v1933 = vsel %vm1026, %v1926, %v1932
        %v1934 = vsel %vm1029, %v1927, %v1933
        %v1935 = vpack.c.b16 %v1934, %v1934
        %v1953 = vunpack.c.l.b16 %v1895
        %v1954 = vunpack.c.l.b16 %v1896
        %v1955 = vunpack.c.l.b16 %v1897
        %v1956 = vunpack.c.l.b16 %v1898
        %v1957 = vunpack.c.l.b16 %v1899
        %v1958 = vunpack.c.l.b16 %v1900
        %v1959 = vunpack.c.l.b16 %v1901
        %v1960 = vunpack.c.l.b16 %v1902
        %v1961 = vunpack.c.l.b16 %v1903
        %v1962 = vunpack.c.l.b16 %v1904
        %v1963 = vunpack.c.l.b16 %v1905
        %v1964 = vunpack.c.l.b16 %v1906
        %v1965 = vunpack.c.l.b16 %v1907
        %v1966 = vunpack.c.l.b16 %v1908
        %v1967 = vunpack.c.l.b16 %v1909
        %v1968 = vunpack.c.l.b16 %v1910
        %v1969 = vpack.c.b16 %v1954, %v1953
        %v1970 = vpack.c.b16 %v1956, %v1955
        %v1971 = vpack.c.b16 %v1958, %v1957
        %v1972 = vpack.c.b16 %v1960, %v1959
        %v1973 = vpack.c.b16 %v1962, %v1961
        %v1974 = vpack.c.b16 %v1964, %v1963
        %v1975 = vpack.c.b16 %v1966, %v1965
        %v1976 = vpack.c.b16 %v1968, %v1967
        %1985 = vmatpush.bf16.msra.mxu0 %v1976
        %1986 = vmatpush.bf16.msra.mxu0 %v1975
        %1987 = vmatpush.bf16.msra.mxu0 %v1974
        %1988 = vmatpush.bf16.msra.mxu0 %v1973
        %1989 = vmatpush.bf16.msra.mxu0 %v1972
        %1990 = vmatpush.bf16.msra.mxu0 %v1971
        %1991 = vmatpush.bf16.msra.mxu0 %v1970
        %1992 = vmatpush.bf16.msra.mxu0 %v1969
        %1993 = vmatmul.bf16.gmra.mxu0 %v1935
        %v1994 = vpop.f32.mrf.mxu0
        %v1995 = vadd.f32 %v1911, %v1994
        %v1996 = vpop.f32.mrf.mxu0
        %1997 = vdwg.mxu0
        %v1999 = vrot.slane %v1995, 1
        %v2000 = vrot.slane %v1995, 2
        %v2001 = vrot.slane %v1995, 3
        %v2002 = vrot.slane %v1995, 4
        %v2003 = vrot.slane %v1995, 5
        %v2004 = vrot.slane %v1995, 6
        %v2005 = vrot.slane %v1995, 7
        %v2014 = vadd.f32 %v712, %v1995
        %v2015 = vadd.f32 %v714, %v1999
        %v2016 = vadd.f32 %v716, %v2000
        %v2017 = vadd.f32 %v718, %v2001
        %v2018 = vadd.f32 %v720, %v2002
        %v2019 = vadd.f32 %v722, %v2003
        %v2020 = vadd.f32 %v724, %v2004
        %v2021 = vadd.f32 %v726, %v2005
        %v2022 = vld [vmem:[#allocation10 + $0x5] ss:$0 sm:$0xff]
        %v2023 = vld [vmem:[#allocation10 + $0x6] ss:$0 sm:$0xff]
        %v2032 = vrot.slane %v2015, 7
        %v2033 = vsel %vm1011, %v2032, %v2014
        %v2034 = vrot.slane %v2016, 6
        %v2035 = vsel %vm1014, %v2034, %v2033
        %v2036 = vrot.slane %v2017, 5
        %v2037 = vsel %vm1017, %v2036, %v2035
        %v2038 = vrot.slane %v2018, 4
        %v2039 = vsel %vm1020, %v2038, %v2037
        %v2040 = vrot.slane %v2019, 3
        %v2041 = vsel %vm1023, %v2040, %v2039
        %v2042 = vrot.slane %v2020, 2
        %v2043 = vsel %vm1026, %v2042, %v2041
        %v2044 = vrot.slane %v2021, 1
        %v2045 = vsel %vm1029, %v2044, %v2043
        %2047 = vadd.xlane.f32.xlu0 %v2045
        %v2048 = vpop.xlane.xlu0 %2047
        %v2049 = vmul.f32 %v2048, %v407
        %v2051 = vrot.slane %v2049, 1
        %v2052 = vrot.slane %v2049, 2
        %v2053 = vrot.slane %v2049, 3
        %v2054 = vrot.slane %v2049, 4
        %v2055 = vrot.slane %v2049, 5
        %v2056 = vrot.slane %v2049, 6
        %v2057 = vrot.slane %v2049, 7
        %v2066 = vsub.f32 %v2014, %v2049
        %v2067 = vsub.f32 %v2015, %v2051
        %v2068 = vsub.f32 %v2016, %v2052
        %v2069 = vsub.f32 %v2017, %v2053
        %v2070 = vsub.f32 %v2018, %v2054
        %v2071 = vsub.f32 %v2019, %v2055
        %v2072 = vsub.f32 %v2020, %v2056
        %v2073 = vsub.f32 %v2021, %v2057
        %v2074 = vmul.f32 %v2066, %v2066
        %v2075 = vmul.f32 %v2067, %v2067
        %v2076 = vmul.f32 %v2068, %v2068
        %v2077 = vmul.f32 %v2069, %v2069
        %v2078 = vmul.f32 %v2070, %v2070
        %v2079 = vmul.f32 %v2071, %v2071
        %v2080 = vmul.f32 %v2072, %v2072
        %v2081 = vmul.f32 %v2073, %v2073
        %v2090 = vrot.slane %v2075, 7
        %v2091 = vsel %vm1011, %v2090, %v2074
        %v2092 = vrot.slane %v2076, 6
        %v2093 = vsel %vm1014, %v2092, %v2091
        %v2094 = vrot.slane %v2077, 5
        %v2095 = vsel %vm1017, %v2094, %v2093
        %v2096 = vrot.slane %v2078, 4
        %v2097 = vsel %vm1020, %v2096, %v2095
        %v2098 = vrot.slane %v2079, 3
        %v2099 = vsel %vm1023, %v2098, %v2097
        %v2100 = vrot.slane %v2080, 2
        %v2101 = vsel %vm1026, %v2100, %v2099
        %v2102 = vrot.slane %v2081, 1
        %v2103 = vsel %vm1029, %v2102, %v2101
        %2105 = vadd.xlane.f32.xlu0 %v2103
        %v2106 = vpop.xlane.xlu0 %2105
        %v2107 = vmul.f32 %v2106, %v407
        %v2108 = vadd.f32 %v2107, 1e-12
        %v2109 = vrsqrt.pop %v2108
        %v2110 = vmul.f32 %v2109, %v2108
        %v2111 = vmul.f32 %v2110, %v2109
        %v2112 = vmul.f32 0.5, %v2111
        %v2113 = vsub.f32 1.5, %v2112
        %v2114 = vmul.f32 %v2109, %v2113
        %vm2115 = vweird.f32 %v2108
        %vm2116 = vweird.f32 %v2109
        %vm2117 = vmor %vm2115, %vm2116
        %v2118 = vsel %vm2117, %v2109, %v2114
        %v2120 = vrot.slane %v2118, 1
        %v2121 = vrot.slane %v2118, 2
        %v2122 = vrot.slane %v2118, 3
        %v2123 = vrot.slane %v2118, 4
        %v2124 = vrot.slane %v2118, 5
        %v2125 = vrot.slane %v2118, 6
        %v2126 = vrot.slane %v2118, 7
        %v2135 = vmul.f32 %v2066, %v2118
        %v2136 = vmul.f32 %v2067, %v2120
        %v2137 = vmul.f32 %v2068, %v2121
        %v2138 = vmul.f32 %v2069, %v2122
        %v2139 = vmul.f32 %v2070, %v2123
        %v2140 = vmul.f32 %v2071, %v2124
        %v2141 = vmul.f32 %v2072, %v2125
        %v2142 = vmul.f32 %v2073, %v2126
        %v2143 = vmul.f32 %v2135, %v2022
        %v2144 = vmul.f32 %v2136, %v2022
        %v2145 = vmul.f32 %v2137, %v2022
        %v2146 = vmul.f32 %v2138, %v2022
        %v2147 = vmul.f32 %v2139, %v2022
        %v2148 = vmul.f32 %v2140, %v2022
        %v2149 = vmul.f32 %v2141, %v2022
        %v2150 = vmul.f32 %v2142, %v2022
        %v2151 = vadd.f32 %v2143, %v2023
        %v2152 = vadd.f32 %v2144, %v2023
        %v2153 = vadd.f32 %v2145, %v2023
        %v2154 = vadd.f32 %v2146, %v2023
        %v2155 = vadd.f32 %v2147, %v2023
        %v2156 = vadd.f32 %v2148, %v2023
        %v2157 = vadd.f32 %v2149, %v2023
        %v2158 = vadd.f32 %v2150, %v2023
        %v2159 = vpack.c.bf16 %v2151, %v2151
        %v2160 = vpack.c.bf16 %v2152, %v2152
        %v2161 = vpack.c.bf16 %v2153, %v2153
        %v2162 = vpack.c.bf16 %v2154, %v2154
        %v2163 = vpack.c.bf16 %v2155, %v2155
        %v2164 = vpack.c.bf16 %v2156, %v2156
        %v2165 = vpack.c.bf16 %v2157, %v2157
        %v2166 = vpack.c.bf16 %v2158, %v2158
        %v2167 = vld [vmem:[#allocation7 + $0x10] sm:$0xff]
        %v2168 = vld [vmem:[#allocation7 + $0x18] sm:$0xff]
        %v2169 = vld [vmem:[#allocation7 + $0x38] sm:$0xff]
        %v2170 = vld [vmem:[#allocation7 + $0x40] sm:$0xff]
        %v2171 = vld [vmem:[#allocation7 + $0x60] sm:$0xff]
        %v2172 = vld [vmem:[#allocation7 + $0x68] sm:$0xff]
        %v2173 = vld [vmem:[#allocation7 + $0x88] sm:$0xff]
        %v2174 = vld [vmem:[#allocation7 + $0x90] sm:$0xff]
        %v2175 = vld [vmem:[#allocation7 + $0xb0] sm:$0xff]
        %v2176 = vld [vmem:[#allocation7 + $0xb8] sm:$0xff]
        %v2177 = vld [vmem:[#allocation7 + $0xd8] sm:$0xff]
        %v2178 = vld [vmem:[#allocation7 + $0xe0] sm:$0xff]
        %v2179 = vld [vmem:[#allocation7 + $0x100] sm:$0xff]
        %v2180 = vld [vmem:[#allocation7 + $0x108] sm:$0xff]
        %v2181 = vld [vmem:[#allocation7 + $0x128] sm:$0xff]
        %v2182 = vld [vmem:[#allocation7 + $0x130] sm:$0xff]
        %v2183 = vld [vmem:[#allocation7 + $0x150] sm:$0xff]
        %v2184 = vld [vmem:[#allocation7 + $0x158] sm:$0xff]
        %v2185 = vld [vmem:[#allocation7 + $0x178] sm:$0xff]
        %v2186 = vld [vmem:[#allocation7 + $0x180] sm:$0xff]
        %v2187 = vld [vmem:[#allocation7 + $0x1a0] sm:$0xff]
        %v2188 = vld [vmem:[#allocation7 + $0x1a8] sm:$0xff]
        %v2189 = vld [vmem:[#allocation7 + $0x1c8] sm:$0xff]
        %v2190 = vld [vmem:[#allocation7 + $0x1d0] sm:$0xff]
        %v2191 = vld [vmem:[#allocation7 + $0x1f0] sm:$0xff]
        %v2192 = vld [vmem:[#allocation7 + $0x1f8] sm:$0xff]
        %v2193 = vld [vmem:[#allocation7 + $0x218] sm:$0xff]
        %v2194 = vld [vmem:[#allocation7 + $0x220] sm:$0xff]
        %v2195 = vld [vmem:[#allocation7 + $0x240] sm:$0xff]
        %v2196 = vld [vmem:[#allocation7 + $0x248] sm:$0xff]
        %v2197 = vld [vmem:[#allocation7 + $0x268] sm:$0xff]
        %v2198 = vld [vmem:[#allocation7 + $0x270] sm:$0xff]
        %s2199 = scalar_lea.vmem [#allocation10], 7
        %v2200 = vld [vmem:[%s2199] ss:$8 sm:$0xf]
        %v2202 = vperm.slane %v2200, 0
        %v2203 = vperm.slane %v2200, 1
        %v2204 = vperm.slane %v2200, 2
        %v2205 = vperm.slane %v2200, 3
        %v2218 = vunpack.c.l.b16 %v2159
        %v2219 = vunpack.c.l.b16 %v2160
        %v2220 = vunpack.c.l.b16 %v2161
        %v2221 = vunpack.c.l.b16 %v2162
        %v2222 = vunpack.c.l.b16 %v2163
        %v2223 = vunpack.c.l.b16 %v2164
        %v2224 = vunpack.c.l.b16 %v2165
        %v2225 = vunpack.c.l.b16 %v2166
        %v2226 = vrot.slane %v2219, 7
        %v2227 = vsel %vm1011, %v2226, %v2218
        %v2228 = vrot.slane %v2220, 6
        %v2229 = vsel %vm1014, %v2228, %v2227
        %v2230 = vrot.slane %v2221, 5
        %v2231 = vsel %vm1017, %v2230, %v2229
        %v2232 = vrot.slane %v2222, 4
        %v2233 = vsel %vm1020, %v2232, %v2231
        %v2234 = vrot.slane %v2223, 3
        %v2235 = vsel %vm1023, %v2234, %v2233
        %v2236 = vrot.slane %v2224, 2
        %v2237 = vsel %vm1026, %v2236, %v2235
        %v2238 = vrot.slane %v2225, 1
        %v2239 = vsel %vm1029, %v2238, %v2237
        %v2240 = vpack.c.b16 %v2239, %v2239
        %v2274 = vunpack.c.l.b16 %v2167
        %v2275 = vunpack.c.h.b16 %v2167
        %v2276 = vunpack.c.l.b16 %v2168
        %v2277 = vunpack.c.h.b16 %v2168
        %v2278 = vunpack.c.l.b16 %v2169
        %v2279 = vunpack.c.h.b16 %v2169
        %v2280 = vunpack.c.l.b16 %v2170
        %v2281 = vunpack.c.h.b16 %v2170
        %v2282 = vunpack.c.l.b16 %v2171
        %v2283 = vunpack.c.h.b16 %v2171
        %v2284 = vunpack.c.l.b16 %v2172
        %v2285 = vunpack.c.h.b16 %v2172
        %v2286 = vunpack.c.l.b16 %v2173
        %v2287 = vunpack.c.h.b16 %v2173
        %v2288 = vunpack.c.l.b16 %v2174
        %v2289 = vunpack.c.h.b16 %v2174
        %v2290 = vunpack.c.l.b16 %v2175
        %v2291 = vunpack.c.h.b16 %v2175
        %v2292 = vunpack.c.l.b16 %v2176
        %v2293 = vunpack.c.h.b16 %v2176
        %v2294 = vunpack.c.l.b16 %v2177
        %v2295 = vunpack.c.h.b16 %v2177
        %v2296 = vunpack.c.l.b16 %v2178
        %v2297 = vunpack.c.h.b16 %v2178
        %v2298 = vunpack.c.l.b16 %v2179
        %v2299 = vunpack.c.h.b16 %v2179
        %v2300 = vunpack.c.l.b16 %v2180
        %v2301 = vunpack.c.h.b16 %v2180
        %v2302 = vunpack.c.l.b16 %v2181
        %v2303 = vunpack.c.h.b16 %v2181
        %v2304 = vunpack.c.l.b16 %v2182
        %v2305 = vunpack.c.h.b16 %v2182
        %v2306 = vunpack.c.l.b16 %v2183
        %v2307 = vunpack.c.h.b16 %v2183
        %v2308 = vunpack.c.l.b16 %v2184
        %v2309 = vunpack.c.h.b16 %v2184
        %v2310 = vunpack.c.l.b16 %v2185
        %v2311 = vunpack.c.h.b16 %v2185
        %v2312 = vunpack.c.l.b16 %v2186
        %v2313 = vunpack.c.h.b16 %v2186
        %v2314 = vunpack.c.l.b16 %v2187
        %v2315 = vunpack.c.h.b16 %v2187
        %v2316 = vunpack.c.l.b16 %v2188
        %v2317 = vunpack.c.h.b16 %v2188
        %v2318 = vunpack.c.l.b16 %v2189
        %v2319 = vunpack.c.h.b16 %v2189
        %v2320 = vunpack.c.l.b16 %v2190
        %v2321 = vunpack.c.h.b16 %v2190
        %v2322 = vunpack.c.l.b16 %v2191
        %v2323 = vunpack.c.h.b16 %v2191
        %v2324 = vunpack.c.l.b16 %v2192
        %v2325 = vunpack.c.h.b16 %v2192
        %v2326 = vunpack.c.l.b16 %v2193
        %v2327 = vunpack.c.h.b16 %v2193
        %v2328 = vunpack.c.l.b16 %v2194
        %v2329 = vunpack.c.h.b16 %v2194
        %v2330 = vunpack.c.l.b16 %v2195
        %v2331 = vunpack.c.h.b16 %v2195
        %v2332 = vunpack.c.l.b16 %v2196
        %v2333 = vunpack.c.h.b16 %v2196
        %v2334 = vunpack.c.l.b16 %v2197
        %v2335 = vunpack.c.h.b16 %v2197
        %v2336 = vunpack.c.l.b16 %v2198
        %v2337 = vunpack.c.h.b16 %v2198
        %v2338 = vpack.c.b16 %v2278, %v2274
        %v2339 = vpack.c.b16 %v2279, %v2275
        %v2340 = vpack.c.b16 %v2280, %v2276
        %v2341 = vpack.c.b16 %v2281, %v2277
        %v2342 = vpack.c.b16 %v2286, %v2282
        %v2343 = vpack.c.b16 %v2287, %v2283
        %v2344 = vpack.c.b16 %v2288, %v2284
        %v2345 = vpack.c.b16 %v2289, %v2285
        %v2346 = vpack.c.b16 %v2294, %v2290
        %v2347 = vpack.c.b16 %v2295, %v2291
        %v2348 = vpack.c.b16 %v2296, %v2292
        %v2349 = vpack.c.b16 %v2297, %v2293
        %v2350 = vpack.c.b16 %v2302, %v2298
        %v2351 = vpack.c.b16 %v2303, %v2299
        %v2352 = vpack.c.b16 %v2304, %v2300
        %v2353 = vpack.c.b16 %v2305, %v2301
        %v2354 = vpack.c.b16 %v2310, %v2306
        %v2355 = vpack.c.b16 %v2311, %v2307
        %v2356 = vpack.c.b16 %v2312, %v2308
        %v2357 = vpack.c.b16 %v2313, %v2309
        %v2358 = vpack.c.b16 %v2318, %v2314
        %v2359 = vpack.c.b16 %v2319, %v2315
        %v2360 = vpack.c.b16 %v2320, %v2316
        %v2361 = vpack.c.b16 %v2321, %v2317
        %v2362 = vpack.c.b16 %v2326, %v2322
        %v2363 = vpack.c.b16 %v2327, %v2323
        %v2364 = vpack.c.b16 %v2328, %v2324
        %v2365 = vpack.c.b16 %v2329, %v2325
        %v2366 = vpack.c.b16 %v2334, %v2330
        %v2367 = vpack.c.b16 %v2335, %v2331
        %v2368 = vpack.c.b16 %v2336, %v2332
        %v2369 = vpack.c.b16 %v2337, %v2333
        %2402 = vmatpush.bf16.msra.mxu0 %v2366
        %2403 = vmatpush.bf16.msra.mxu0 %v2362
        %2404 = vmatpush.bf16.msra.mxu0 %v2358
        %2405 = vmatpush.bf16.msra.mxu0 %v2354
        %2406 = vmatpush.bf16.msra.mxu0 %v2350
        %2407 = vmatpush.bf16.msra.mxu0 %v2346
        %2408 = vmatpush.bf16.msra.mxu0 %v2342
        %2409 = vmatpush.bf16.msra.mxu0 %v2338
        %2410 = vmatmul.bf16.gmra.mxu0 %v2240
        %v2411 = vpop.f32.mrf.mxu0
        %v2412 = vadd.f32 %v2202, %v2411
        %v2413 = vpop.f32.mrf.mxu0
        %2414 = vdwg.mxu0
        %2415 = vmatpush.bf16.msra.mxu0 %v2367
        %2416 = vmatpush.bf16.msra.mxu0 %v2363
        %2417 = vmatpush.bf16.msra.mxu0 %v2359
        %2418 = vmatpush.bf16.msra.mxu0 %v2355
        %2419 = vmatpush.bf16.msra.mxu0 %v2351
        %2420 = vmatpush.bf16.msra.mxu0 %v2347
        %2421 = vmatpush.bf16.msra.mxu0 %v2343
        %2422 = vmatpush.bf16.msra.mxu0 %v2339
        %2423 = vmatmul.bf16.gmra.mxu0 %v2240
        %v2424 = vpop.f32.mrf.mxu0
        %v2425 = vadd.f32 %v2203, %v2424
        %v2426 = vpop.f32.mrf.mxu0
        %2427 = vdwg.mxu0
        %2428 = vmatpush.bf16.msra.mxu0 %v2368
        %2429 = vmatpush.bf16.msra.mxu0 %v2364
        %2430 = vmatpush.bf16.msra.mxu0 %v2360
        %2431 = vmatpush.bf16.msra.mxu0 %v2356
        %2432 = vmatpush.bf16.msra.mxu0 %v2352
        %2433 = vmatpush.bf16.msra.mxu0 %v2348
        %2434 = vmatpush.bf16.msra.mxu0 %v2344
        %2435 = vmatpush.bf16.msra.mxu0 %v2340
        %2436 = vmatmul.bf16.gmra.mxu0 %v2240
        %v2437 = vpop.f32.mrf.mxu0
        %v2438 = vadd.f32 %v2204, %v2437
        %v2439 = vpop.f32.mrf.mxu0
        %2440 = vdwg.mxu0
        %2441 = vmatpush.bf16.msra.mxu0 %v2369
        %2442 = vmatpush.bf16.msra.mxu0 %v2365
        %2443 = vmatpush.bf16.msra.mxu0 %v2361
        %2444 = vmatpush.bf16.msra.mxu0 %v2357
        %2445 = vmatpush.bf16.msra.mxu0 %v2353
        %2446 = vmatpush.bf16.msra.mxu0 %v2349
        %2447 = vmatpush.bf16.msra.mxu0 %v2345
        %2448 = vmatpush.bf16.msra.mxu0 %v2341
        %2449 = vmatmul.bf16.gmra.mxu0 %v2240
        %v2450 = vpop.f32.mrf.mxu0
        %v2451 = vadd.f32 %v2205, %v2450
        %v2452 = vpop.f32.mrf.mxu0
        %2453 = vdwg.mxu0
        %v2454 = vmul.f32 %v2412, %v2412
        %v2455 = vmul.f32 %v2425, %v2425
        %v2456 = vmul.f32 %v2438, %v2438
        %v2457 = vmul.f32 %v2451, %v2451
        %v2458 = vmul.f32 %v2412, %v2454
        %v2459 = vmul.f32 %v2425, %v2455
        %v2460 = vmul.f32 %v2438, %v2456
        %v2461 = vmul.f32 %v2451, %v2457
        %v2462 = vmul.f32 %v2458, 0.044715
        %v2463 = vmul.f32 %v2459, 0.044715
        %v2464 = vmul.f32 %v2460, 0.044715
        %v2465 = vmul.f32 %v2461, 0.044715
        %v2466 = vadd.f32 %v2412, %v2462
        %v2467 = vadd.f32 %v2425, %v2463
        %v2468 = vadd.f32 %v2438, %v2464
        %v2469 = vadd.f32 %v2451, %v2465
        %v2470 = vmul.f32 %v2466, 0.7978846
        %v2471 = vmul.f32 %v2467, 0.7978846
        %v2472 = vmul.f32 %v2468, 0.7978846
        %v2473 = vmul.f32 %v2469, 0.7978846
        %v2474 = vtanh.pop %v2470
        %v2475 = vtanh.pop %v2471
        %v2476 = vtanh.pop %v2472
        %v2477 = vtanh.pop %v2473
        %v2478 = vadd.f32 %v2474, 1.0
        %v2479 = vadd.f32 %v2475, 1.0
        %v2480 = vadd.f32 %v2476, 1.0
        %v2481 = vadd.f32 %v2477, 1.0
        %v2482 = vmul.f32 %v2478, 0.5
        %v2483 = vmul.f32 %v2479, 0.5
        %v2484 = vmul.f32 %v2480, 0.5
        %v2485 = vmul.f32 %v2481, 0.5
        %v2486 = vmul.f32 %v2412, %v2482
        %v2487 = vmul.f32 %v2425, %v2483
        %v2488 = vmul.f32 %v2438, %v2484
        %v2489 = vmul.f32 %v2451, %v2485
        %v2490 = vpack.c.bf16 %v2486, %v2486
        %v2491 = vpack.c.bf16 %v2487, %v2487
        %v2492 = vpack.c.bf16 %v2488, %v2488
        %v2493 = vpack.c.bf16 %v2489, %v2489
        %v2494 = vld [vmem:[#allocation8] sm:$0xf]
        %v2495 = vld [vmem:[#allocation8 + $0x4] sm:$0xf]
        %v2496 = vld [vmem:[#allocation8 + $0x8] sm:$0xf]
        %v2497 = vld [vmem:[#allocation8 + $0xc] sm:$0xf]
        %v2498 = vld [vmem:[#allocation8 + $0x10] sm:$0xf]
        %v2499 = vld [vmem:[#allocation8 + $0x14] sm:$0xf]
        %v2500 = vld [vmem:[#allocation8 + $0x18] sm:$0xf]
        %v2501 = vld [vmem:[#allocation8 + $0x1c] sm:$0xf]
        %v2502 = vld [vmem:[#allocation8 + $0x20] sm:$0xf]
        %v2503 = vld [vmem:[#allocation8 + $0x24] sm:$0xf]
        %v2504 = vld [vmem:[#allocation8 + $0x28] sm:$0xf]
        %v2505 = vld [vmem:[#allocation8 + $0x2c] sm:$0xf]
        %v2506 = vld [vmem:[#allocation8 + $0x30] sm:$0xf]
        %v2507 = vld [vmem:[#allocation8 + $0x34] sm:$0xf]
        %v2508 = vld [vmem:[#allocation8 + $0x38] sm:$0xf]
        %v2509 = vld [vmem:[#allocation8 + $0x3c] sm:$0xf]
        %v2510 = vld [vmem:[#allocation8 + $0x40] sm:$0xf]
        %v2511 = vld [vmem:[#allocation8 + $0x44] sm:$0xf]
        %v2512 = vld [vmem:[#allocation8 + $0x48] sm:$0xf]
        %v2513 = vld [vmem:[#allocation8 + $0x4c] sm:$0xf]
        %v2514 = vld [vmem:[#allocation8 + $0x50] sm:$0xf]
        %v2515 = vld [vmem:[#allocation8 + $0x54] sm:$0xf]
        %v2516 = vld [vmem:[#allocation8 + $0x58] sm:$0xf]
        %v2517 = vld [vmem:[#allocation8 + $0x5c] sm:$0xf]
        %v2518 = vld [vmem:[#allocation8 + $0x60] sm:$0xf]
        %v2519 = vld [vmem:[#allocation8 + $0x64] sm:$0xf]
        %v2520 = vld [vmem:[#allocation8 + $0x68] sm:$0xf]
        %v2521 = vld [vmem:[#allocation8 + $0x6c] sm:$0xf]
        %v2522 = vld [vmem:[#allocation8 + $0x70] sm:$0xf]
        %v2523 = vld [vmem:[#allocation8 + $0x74] sm:$0xf]
        %v2524 = vld [vmem:[#allocation8 + $0x78] sm:$0xf]
        %v2525 = vld [vmem:[#allocation8 + $0x7c] sm:$0xf]
        %v2526 = vld [vmem:[#allocation8 + $0x80] sm:$0xf]
        %v2527 = vld [vmem:[#allocation8 + $0x84] sm:$0xf]
        %v2528 = vld [vmem:[#allocation8 + $0x88] sm:$0xf]
        %v2529 = vld [vmem:[#allocation8 + $0x8c] sm:$0xf]
        %v2530 = vld [vmem:[#allocation8 + $0x90] sm:$0xf]
        %v2531 = vld [vmem:[#allocation8 + $0x94] sm:$0xf]
        %v2532 = vld [vmem:[#allocation8 + $0x98] sm:$0xf]
        %v2533 = vld [vmem:[#allocation8 + $0x9c] sm:$0xf]
        %v2534 = vld [vmem:[#allocation8 + $0xa0] sm:$0xf]
        %v2535 = vld [vmem:[#allocation8 + $0xa4] sm:$0xf]
        %v2536 = vld [vmem:[#allocation8 + $0xa8] sm:$0xf]
        %v2537 = vld [vmem:[#allocation8 + $0xac] sm:$0xf]
        %v2538 = vld [vmem:[#allocation8 + $0xb0] sm:$0xf]
        %v2539 = vld [vmem:[#allocation8 + $0xb4] sm:$0xf]
        %v2540 = vld [vmem:[#allocation8 + $0xb8] sm:$0xf]
        %v2541 = vld [vmem:[#allocation8 + $0xbc] sm:$0xf]
        %v2542 = vld [vmem:[#allocation8 + $0xc0] sm:$0xf]
        %v2543 = vld [vmem:[#allocation8 + $0xc4] sm:$0xf]
        %v2544 = vld [vmem:[#allocation8 + $0xc8] sm:$0xf]
        %v2545 = vld [vmem:[#allocation8 + $0xcc] sm:$0xf]
        %v2546 = vld [vmem:[#allocation8 + $0xd0] sm:$0xf]
        %v2547 = vld [vmem:[#allocation8 + $0xd4] sm:$0xf]
        %v2548 = vld [vmem:[#allocation8 + $0xd8] sm:$0xf]
        %v2549 = vld [vmem:[#allocation8 + $0xdc] sm:$0xf]
        %v2550 = vld [vmem:[#allocation8 + $0xe0] sm:$0xf]
        %v2551 = vld [vmem:[#allocation8 + $0xe4] sm:$0xf]
        %v2552 = vld [vmem:[#allocation8 + $0xe8] sm:$0xf]
        %v2553 = vld [vmem:[#allocation8 + $0xec] sm:$0xf]
        %v2554 = vld [vmem:[#allocation8 + $0xf0] sm:$0xf]
        %v2555 = vld [vmem:[#allocation8 + $0xf4] sm:$0xf]
        %v2556 = vld [vmem:[#allocation8 + $0xf8] sm:$0xf]
        %v2557 = vld [vmem:[#allocation8 + $0xfc] sm:$0xf]
        %v2558 = vld [vmem:[#allocation10 + $0x20] ss:$0 sm:$0xff]
        %v2623 = vunpack.c.l.b16 %v2494
        %v2624 = vunpack.c.l.b16 %v2495
        %v2625 = vunpack.c.l.b16 %v2496
        %v2626 = vunpack.c.l.b16 %v2497
        %v2627 = vunpack.c.l.b16 %v2498
        %v2628 = vunpack.c.l.b16 %v2499
        %v2629 = vunpack.c.l.b16 %v2500
        %v2630 = vunpack.c.l.b16 %v2501
        %v2631 = vunpack.c.l.b16 %v2502
        %v2632 = vunpack.c.l.b16 %v2503
        %v2633 = vunpack.c.l.b16 %v2504
        %v2634 = vunpack.c.l.b16 %v2505
        %v2635 = vunpack.c.l.b16 %v2506
        %v2636 = vunpack.c.l.b16 %v2507
        %v2637 = vunpack.c.l.b16 %v2508
        %v2638 = vunpack.c.l.b16 %v2509
        %v2639 = vunpack.c.l.b16 %v2510
        %v2640 = vunpack.c.l.b16 %v2511
        %v2641 = vunpack.c.l.b16 %v2512
        %v2642 = vunpack.c.l.b16 %v2513
        %v2643 = vunpack.c.l.b16 %v2514
        %v2644 = vunpack.c.l.b16 %v2515
        %v2645 = vunpack.c.l.b16 %v2516
        %v2646 = vunpack.c.l.b16 %v2517
        %v2647 = vunpack.c.l.b16 %v2518
        %v2648 = vunpack.c.l.b16 %v2519
        %v2649 = vunpack.c.l.b16 %v2520
        %v2650 = vunpack.c.l.b16 %v2521
        %v2651 = vunpack.c.l.b16 %v2522
        %v2652 = vunpack.c.l.b16 %v2523
        %v2653 = vunpack.c.l.b16 %v2524
        %v2654 = vunpack.c.l.b16 %v2525
        %v2655 = vunpack.c.l.b16 %v2526
        %v2656 = vunpack.c.l.b16 %v2527
        %v2657 = vunpack.c.l.b16 %v2528
        %v2658 = vunpack.c.l.b16 %v2529
        %v2659 = vunpack.c.l.b16 %v2530
        %v2660 = vunpack.c.l.b16 %v2531
        %v2661 = vunpack.c.l.b16 %v2532
        %v2662 = vunpack.c.l.b16 %v2533
        %v2663 = vunpack.c.l.b16 %v2534
        %v2664 = vunpack.c.l.b16 %v2535
        %v2665 = vunpack.c.l.b16 %v2536
        %v2666 = vunpack.c.l.b16 %v2537
        %v2667 = vunpack.c.l.b16 %v2538
        %v2668 = vunpack.c.l.b16 %v2539
        %v2669 = vunpack.c.l.b16 %v2540
        %v2670 = vunpack.c.l.b16 %v2541
        %v2671 = vunpack.c.l.b16 %v2542
        %v2672 = vunpack.c.l.b16 %v2543
        %v2673 = vunpack.c.l.b16 %v2544
        %v2674 = vunpack.c.l.b16 %v2545
        %v2675 = vunpack.c.l.b16 %v2546
        %v2676 = vunpack.c.l.b16 %v2547
        %v2677 = vunpack.c.l.b16 %v2548
        %v2678 = vunpack.c.l.b16 %v2549
        %v2679 = vunpack.c.l.b16 %v2550
        %v2680 = vunpack.c.l.b16 %v2551
        %v2681 = vunpack.c.l.b16 %v2552
        %v2682 = vunpack.c.l.b16 %v2553
        %v2683 = vunpack.c.l.b16 %v2554
        %v2684 = vunpack.c.l.b16 %v2555
        %v2685 = vunpack.c.l.b16 %v2556
        %v2686 = vunpack.c.l.b16 %v2557
        %v2687 = vpack.c.b16 %v2624, %v2623
        %v2688 = vpack.c.b16 %v2626, %v2625
        %v2689 = vpack.c.b16 %v2628, %v2627
        %v2690 = vpack.c.b16 %v2630, %v2629
        %v2691 = vpack.c.b16 %v2632, %v2631
        %v2692 = vpack.c.b16 %v2634, %v2633
        %v2693 = vpack.c.b16 %v2636, %v2635
        %v2694 = vpack.c.b16 %v2638, %v2637
        %v2695 = vpack.c.b16 %v2640, %v2639
        %v2696 = vpack.c.b16 %v2642, %v2641
        %v2697 = vpack.c.b16 %v2644, %v2643
        %v2698 = vpack.c.b16 %v2646, %v2645
        %v2699 = vpack.c.b16 %v2648, %v2647
        %v2700 = vpack.c.b16 %v2650, %v2649
        %v2701 = vpack.c.b16 %v2652, %v2651
        %v2702 = vpack.c.b16 %v2654, %v2653
        %v2703 = vpack.c.b16 %v2656, %v2655
        %v2704 = vpack.c.b16 %v2658, %v2657
        %v2705 = vpack.c.b16 %v2660, %v2659
        %v2706 = vpack.c.b16 %v2662, %v2661
        %v2707 = vpack.c.b16 %v2664, %v2663
        %v2708 = vpack.c.b16 %v2666, %v2665
        %v2709 = vpack.c.b16 %v2668, %v2667
        %v2710 = vpack.c.b16 %v2670, %v2669
        %v2711 = vpack.c.b16 %v2672, %v2671
        %v2712 = vpack.c.b16 %v2674, %v2673
        %v2713 = vpack.c.b16 %v2676, %v2675
        %v2714 = vpack.c.b16 %v2678, %v2677
        %v2715 = vpack.c.b16 %v2680, %v2679
        %v2716 = vpack.c.b16 %v2682, %v2681
        %v2717 = vpack.c.b16 %v2684, %v2683
        %v2718 = vpack.c.b16 %v2686, %v2685
        %2751 = vmatpush.bf16.msra.mxu0 %v2694
        %2752 = vmatpush.bf16.msra.mxu0 %v2693
        %2753 = vmatpush.bf16.msra.mxu0 %v2692
        %2754 = vmatpush.bf16.msra.mxu0 %v2691
        %2755 = vmatpush.bf16.msra.mxu0 %v2690
        %2756 = vmatpush.bf16.msra.mxu0 %v2689
        %2757 = vmatpush.bf16.msra.mxu0 %v2688
        %2758 = vmatpush.bf16.msra.mxu0 %v2687
        %2759 = vmatmul.bf16.gmra.mxu0 %v2490
        %v2760 = vpop.f32.mrf.mxu0
        %v2761 = vadd.f32 %v2558, %v2760
        %v2762 = vpop.f32.mrf.mxu0
        %2763 = vdwg.mxu0
        %2764 = vmatpush.bf16.msra.mxu0 %v2702
        %2765 = vmatpush.bf16.msra.mxu0 %v2701
        %2766 = vmatpush.bf16.msra.mxu0 %v2700
        %2767 = vmatpush.bf16.msra.mxu0 %v2699
        %2768 = vmatpush.bf16.msra.mxu0 %v2698
        %2769 = vmatpush.bf16.msra.mxu0 %v2697
        %2770 = vmatpush.bf16.msra.mxu0 %v2696
        %2771 = vmatpush.bf16.msra.mxu0 %v2695
        %2772 = vmatmul.bf16.gmra.mxu0 %v2491
        %v2773 = vpop.f32.mrf.mxu0
        %v2774 = vadd.f32 %v2761, %v2773
        %v2775 = vpop.f32.mrf.mxu0
        %2776 = vdwg.mxu0
        %2777 = vmatpush.bf16.msra.mxu0 %v2710
        %2778 = vmatpush.bf16.msra.mxu0 %v2709
        %2779 = vmatpush.bf16.msra.mxu0 %v2708
        %2780 = vmatpush.bf16.msra.mxu0 %v2707
        %2781 = vmatpush.bf16.msra.mxu0 %v2706
        %2782 = vmatpush.bf16.msra.mxu0 %v2705
        %2783 = vmatpush.bf16.msra.mxu0 %v2704
        %2784 = vmatpush.bf16.msra.mxu0 %v2703
        %2785 = vmatmul.bf16.gmra.mxu0 %v2492
        %v2786 = vpop.f32.mrf.mxu0
        %v2787 = vadd.f32 %v2774, %v2786
        %v2788 = vpop.f32.mrf.mxu0
        %2789 = vdwg.mxu0
        %2790 = vmatpush.bf16.msra.mxu0 %v2718
        %2791 = vmatpush.bf16.msra.mxu0 %v2717
        %2792 = vmatpush.bf16.msra.mxu0 %v2716
        %2793 = vmatpush.bf16.msra.mxu0 %v2715
        %2794 = vmatpush.bf16.msra.mxu0 %v2714
        %2795 = vmatpush.bf16.msra.mxu0 %v2713
        %2796 = vmatpush.bf16.msra.mxu0 %v2712
        %2797 = vmatpush.bf16.msra.mxu0 %v2711
        %2798 = vmatmul.bf16.gmra.mxu0 %v2493
        %v2799 = vpop.f32.mrf.mxu0
        %v2800 = vadd.f32 %v2787, %v2799
        %v2801 = vpop.f32.mrf.mxu0
        %2802 = vdwg.mxu0
        %v2804 = vrot.slane %v2800, 1
        %v2805 = vrot.slane %v2800, 2
        %v2806 = vrot.slane %v2800, 3
        %v2807 = vrot.slane %v2800, 4
        %v2808 = vrot.slane %v2800, 5
        %v2809 = vrot.slane %v2800, 6
        %v2810 = vrot.slane %v2800, 7
        %v2819 = vadd.f32 %v2151, %v2800
        %v2820 = vadd.f32 %v2152, %v2804
        %v2821 = vadd.f32 %v2153, %v2805
        %v2822 = vadd.f32 %v2154, %v2806
        %v2823 = vadd.f32 %v2155, %v2807
        %v2824 = vadd.f32 %v2156, %v2808
        %v2825 = vadd.f32 %v2157, %v2809
        %v2826 = vadd.f32 %v2158, %v2810
        %v2827 = vld [vmem:[#allocation10 + $0x21] ss:$0 sm:$0xff]
        %v2828 = vld [vmem:[#allocation10 + $0x22] ss:$0 sm:$0xff]
        %v2837 = vrot.slane %v2820, 7
        %v2838 = vsel %vm1011, %v2837, %v2819
        %v2839 = vrot.slane %v2821, 6
        %v2840 = vsel %vm1014, %v2839, %v2838
        %v2841 = vrot.slane %v2822, 5
        %v2842 = vsel %vm1017, %v2841, %v2840
        %v2843 = vrot.slane %v2823, 4
        %v2844 = vsel %vm1020, %v2843, %v2842
        %v2845 = vrot.slane %v2824, 3
        %v2846 = vsel %vm1023, %v2845, %v2844
        %v2847 = vrot.slane %v2825, 2
        %v2848 = vsel %vm1026, %v2847, %v2846
        %v2849 = vrot.slane %v2826, 1
        %v2850 = vsel %vm1029, %v2849, %v2848
        %2852 = vadd.xlane.f32.xlu0 %v2850
        %v2853 = vpop.xlane.xlu0 %2852
        %v2854 = vmul.f32 %v2853, %v407
        %v2856 = vrot.slane %v2854, 1
        %v2857 = vrot.slane %v2854, 2
        %v2858 = vrot.slane %v2854, 3
        %v2859 = vrot.slane %v2854, 4
        %v2860 = vrot.slane %v2854, 5
        %v2861 = vrot.slane %v2854, 6
        %v2862 = vrot.slane %v2854, 7
        %v2871 = vsub.f32 %v2819, %v2854
        %v2872 = vsub.f32 %v2820, %v2856
        %v2873 = vsub.f32 %v2821, %v2857
        %v2874 = vsub.f32 %v2822, %v2858
        %v2875 = vsub.f32 %v2823, %v2859
        %v2876 = vsub.f32 %v2824, %v2860
        %v2877 = vsub.f32 %v2825, %v2861
        %v2878 = vsub.f32 %v2826, %v2862
        %v2879 = vmul.f32 %v2871, %v2871
        %v2880 = vmul.f32 %v2872, %v2872
        %v2881 = vmul.f32 %v2873, %v2873
        %v2882 = vmul.f32 %v2874, %v2874
        %v2883 = vmul.f32 %v2875, %v2875
        %v2884 = vmul.f32 %v2876, %v2876
        %v2885 = vmul.f32 %v2877, %v2877
        %v2886 = vmul.f32 %v2878, %v2878
        %v2895 = vrot.slane %v2880, 7
        %v2896 = vsel %vm1011, %v2895, %v2879
        %v2897 = vrot.slane %v2881, 6
        %v2898 = vsel %vm1014, %v2897, %v2896
        %v2899 = vrot.slane %v2882, 5
        %v2900 = vsel %vm1017, %v2899, %v2898
        %v2901 = vrot.slane %v2883, 4
        %v2902 = vsel %vm1020, %v2901, %v2900
        %v2903 = vrot.slane %v2884, 3
        %v2904 = vsel %vm1023, %v2903, %v2902
        %v2905 = vrot.slane %v2885, 2
        %v2906 = vsel %vm1026, %v2905, %v2904
        %v2907 = vrot.slane %v2886, 1
        %v2908 = vsel %vm1029, %v2907, %v2906
        %2910 = vadd.xlane.f32.xlu0 %v2908
        %v2911 = vpop.xlane.xlu0 %2910
        %v2912 = vmul.f32 %v2911, %v407
        %v2913 = vadd.f32 %v2912, 1e-12
        %v2914 = vrsqrt.pop %v2913
        %v2915 = vmul.f32 %v2914, %v2913
        %v2916 = vmul.f32 %v2915, %v2914
        %v2917 = vmul.f32 0.5, %v2916
        %v2918 = vsub.f32 1.5, %v2917
        %v2919 = vmul.f32 %v2914, %v2918
        %vm2920 = vweird.f32 %v2913
        %vm2921 = vweird.f32 %v2914
        %vm2922 = vmor %vm2920, %vm2921
        %v2923 = vsel %vm2922, %v2914, %v2919
        %v2925 = vrot.slane %v2923, 1
        %v2926 = vrot.slane %v2923, 2
        %v2927 = vrot.slane %v2923, 3
        %v2928 = vrot.slane %v2923, 4
        %v2929 = vrot.slane %v2923, 5
        %v2930 = vrot.slane %v2923, 6
        %v2931 = vrot.slane %v2923, 7
        %v2940 = vmul.f32 %v2871, %v2923
        %v2941 = vmul.f32 %v2872, %v2925
        %v2942 = vmul.f32 %v2873, %v2926
        %v2943 = vmul.f32 %v2874, %v2927
        %v2944 = vmul.f32 %v2875, %v2928
        %v2945 = vmul.f32 %v2876, %v2929
        %v2946 = vmul.f32 %v2877, %v2930
        %v2947 = vmul.f32 %v2878, %v2931
        %v2948 = vmul.f32 %v2940, %v2827
        %v2949 = vmul.f32 %v2941, %v2827
        %v2950 = vmul.f32 %v2942, %v2827
        %v2951 = vmul.f32 %v2943, %v2827
        %v2952 = vmul.f32 %v2944, %v2827
        %v2953 = vmul.f32 %v2945, %v2827
        %v2954 = vmul.f32 %v2946, %v2827
        %v2955 = vmul.f32 %v2947, %v2827
        %v2956 = vadd.f32 %v2948, %v2828
        %v2957 = vadd.f32 %v2949, %v2828
        %v2958 = vadd.f32 %v2950, %v2828
        %v2959 = vadd.f32 %v2951, %v2828
        %v2960 = vadd.f32 %v2952, %v2828
        %v2961 = vadd.f32 %v2953, %v2828
        %v2962 = vadd.f32 %v2954, %v2828
        %v2963 = vadd.f32 %v2955, %v2828
        %v2964 = vpack.c.bf16 %v2956, %v2956
        %v2965 = vpack.c.bf16 %v2957, %v2957
        %v2966 = vpack.c.bf16 %v2958, %v2958
        %v2967 = vpack.c.bf16 %v2959, %v2959
        %v2968 = vpack.c.bf16 %v2960, %v2960
        %v2969 = vpack.c.bf16 %v2961, %v2961
        %v2970 = vpack.c.bf16 %v2962, %v2962
        %v2971 = vpack.c.bf16 %v2963, %v2963
        %v2972 = vld [vmem:[#allocation7 + $0x20] sm:$0xf]
        %v2973 = vld [vmem:[#allocation7 + $0x48] sm:$0xf]
        %v2974 = vld [vmem:[#allocation7 + $0x70] sm:$0xf]
        %v2975 = vld [vmem:[#allocation7 + $0x98] sm:$0xf]
        %v2976 = vld [vmem:[#allocation7 + $0xc0] sm:$0xf]
        %v2977 = vld [vmem:[#allocation7 + $0xe8] sm:$0xf]
        %v2978 = vld [vmem:[#allocation7 + $0x110] sm:$0xf]
        %v2979 = vld [vmem:[#allocation7 + $0x138] sm:$0xf]
        %v2980 = vld [vmem:[#allocation7 + $0x160] sm:$0xf]
        %v2981 = vld [vmem:[#allocation7 + $0x188] sm:$0xf]
        %v2982 = vld [vmem:[#allocation7 + $0x1b0] sm:$0xf]
        %v2983 = vld [vmem:[#allocation7 + $0x1d8] sm:$0xf]
        %v2984 = vld [vmem:[#allocation7 + $0x200] sm:$0xf]
        %v2985 = vld [vmem:[#allocation7 + $0x228] sm:$0xf]
        %v2986 = vld [vmem:[#allocation7 + $0x250] sm:$0xf]
        %v2987 = vld [vmem:[#allocation7 + $0x278] sm:$0xf]
        %v2988 = vld [vmem:[#allocation10 + $0x23] ss:$0 sm:$0xff]
        %v2997 = vunpack.c.l.b16 %v2964
        %v2998 = vunpack.c.l.b16 %v2965
        %v2999 = vunpack.c.l.b16 %v2966
        %v3000 = vunpack.c.l.b16 %v2967
        %v3001 = vunpack.c.l.b16 %v2968
        %v3002 = vunpack.c.l.b16 %v2969
        %v3003 = vunpack.c.l.b16 %v2970
        %v3004 = vunpack.c.l.b16 %v2971
        %v3005 = vrot.slane %v2998, 7
        %v3006 = vsel %vm1011, %v3005, %v2997
        %v3007 = vrot.slane %v2999, 6
        %v3008 = vsel %vm1014, %v3007, %v3006
        %v3009 = vrot.slane %v3000, 5
        %v3010 = vsel %vm1017, %v3009, %v3008
        %v3011 = vrot.slane %v3001, 4
        %v3012 = vsel %vm1020, %v3011, %v3010
        %v3013 = vrot.slane %v3002, 3
        %v3014 = vsel %vm1023, %v3013, %v3012
        %v3015 = vrot.slane %v3003, 2
        %v3016 = vsel %vm1026, %v3015, %v3014
        %v3017 = vrot.slane %v3004, 1
        %v3018 = vsel %vm1029, %v3017, %v3016
        %v3019 = vpack.c.b16 %v3018, %v3018
        %v3037 = vunpack.c.l.b16 %v2972
        %v3038 = vunpack.c.l.b16 %v2973
        %v3039 = vunpack.c.l.b16 %v2974
        %v3040 = vunpack.c.l.b16 %v2975
        %v3041 = vunpack.c.l.b16 %v2976
        %v3042 = vunpack.c.l.b16 %v2977
        %v3043 = vunpack.c.l.b16 %v2978
        %v3044 = vunpack.c.l.b16 %v2979
        %v3045 = vunpack.c.l.b16 %v2980
        %v3046 = vunpack.c.l.b16 %v2981
        %v3047 = vunpack.c.l.b16 %v2982
        %v3048 = vunpack.c.l.b16 %v2983
        %v3049 = vunpack.c.l.b16 %v2984
        %v3050 = vunpack.c.l.b16 %v2985
        %v3051 = vunpack.c.l.b16 %v2986
        %v3052 = vunpack.c.l.b16 %v2987
        %v3053 = vpack.c.b16 %v3038, %v3037
        %v3054 = vpack.c.b16 %v3040, %v3039
        %v3055 = vpack.c.b16 %v3042, %v3041
        %v3056 = vpack.c.b16 %v3044, %v3043
        %v3057 = vpack.c.b16 %v3046, %v3045
        %v3058 = vpack.c.b16 %v3048, %v3047
        %v3059 = vpack.c.b16 %v3050, %v3049
        %v3060 = vpack.c.b16 %v3052, %v3051
        %3069 = vmatpush.bf16.msra.mxu0 %v3060
        %3070 = vmatpush.bf16.msra.mxu0 %v3059
        %3071 = vmatpush.bf16.msra.mxu0 %v3058
        %3072 = vmatpush.bf16.msra.mxu0 %v3057
        %3073 = vmatpush.bf16.msra.mxu0 %v3056
        %3074 = vmatpush.bf16.msra.mxu0 %v3055
        %3075 = vmatpush.bf16.msra.mxu0 %v3054
        %3076 = vmatpush.bf16.msra.mxu0 %v3053
        %3077 = vmatmul.bf16.gmra.mxu0 %v3019
        %v3078 = vpop.f32.mrf.mxu0
        %v3079 = vadd.f32 %v2988, %v3078
        %v3080 = vpop.f32.mrf.mxu0
        %3081 = vdwg.mxu0
        %v3082 = vtanh.pop %v3079
        %v3083 = vpack.c.bf16 %v3082, %v3082
        %v3084 = vld [vmem:[#allocation7 + $0x24] sm:$0xf]
        %v3085 = vld [vmem:[#allocation7 + $0x4c] sm:$0xf]
        %v3086 = vld [vmem:[#allocation7 + $0x74] sm:$0xf]
        %v3087 = vld [vmem:[#allocation7 + $0x9c] sm:$0xf]
        %v3088 = vld [vmem:[#allocation7 + $0xc4] sm:$0xf]
        %v3089 = vld [vmem:[#allocation7 + $0xec] sm:$0xf]
        %v3090 = vld [vmem:[#allocation7 + $0x114] sm:$0xf]
        %v3091 = vld [vmem:[#allocation7 + $0x13c] sm:$0xf]
        %v3092 = vld [vmem:[#allocation7 + $0x164] sm:$0xf]
        %v3093 = vld [vmem:[#allocation7 + $0x18c] sm:$0xf]
        %v3094 = vld [vmem:[#allocation7 + $0x1b4] sm:$0xf]
        %v3095 = vld [vmem:[#allocation7 + $0x1dc] sm:$0xf]
        %v3096 = vld [vmem:[#allocation7 + $0x204] sm:$0xf]
        %v3097 = vld [vmem:[#allocation7 + $0x22c] sm:$0xf]
        %v3098 = vld [vmem:[#allocation7 + $0x254] sm:$0xf]
        %v3099 = vld [vmem:[#allocation7 + $0x27c] sm:$0xf]
        %v3100 = vld [vmem:[#allocation10 + $0x24] ss:$0 sm:$0xff]
        %v3117 = vunpack.c.l.b16 %v3084
        %v3118 = vunpack.c.l.b16 %v3085
        %v3119 = vunpack.c.l.b16 %v3086
        %v3120 = vunpack.c.l.b16 %v3087
        %v3121 = vunpack.c.l.b16 %v3088
        %v3122 = vunpack.c.l.b16 %v3089
        %v3123 = vunpack.c.l.b16 %v3090
        %v3124 = vunpack.c.l.b16 %v3091
        %v3125 = vunpack.c.l.b16 %v3092
        %v3126 = vunpack.c.l.b16 %v3093
        %v3127 = vunpack.c.l.b16 %v3094
        %v3128 = vunpack.c.l.b16 %v3095
        %v3129 = vunpack.c.l.b16 %v3096
        %v3130 = vunpack.c.l.b16 %v3097
        %v3131 = vunpack.c.l.b16 %v3098
        %v3132 = vunpack.c.l.b16 %v3099
        %v3133 = vpack.c.b16 %v3118, %v3117
        %v3134 = vpack.c.b16 %v3120, %v3119
        %v3135 = vpack.c.b16 %v3122, %v3121
        %v3136 = vpack.c.b16 %v3124, %v3123
        %v3137 = vpack.c.b16 %v3126, %v3125
        %v3138 = vpack.c.b16 %v3128, %v3127
        %v3139 = vpack.c.b16 %v3130, %v3129
        %v3140 = vpack.c.b16 %v3132, %v3131
        %3149 = vmatpush.bf16.msra.mxu0 %v3140
        %3150 = vmatpush.bf16.msra.mxu0 %v3139
        %3151 = vmatpush.bf16.msra.mxu0 %v3138
        %3152 = vmatpush.bf16.msra.mxu0 %v3137
        %3153 = vmatpush.bf16.msra.mxu0 %v3136
        %3154 = vmatpush.bf16.msra.mxu0 %v3135
        %3155 = vmatpush.bf16.msra.mxu0 %v3134
        %3156 = vmatpush.bf16.msra.mxu0 %v3133
        %3157 = vmatmul.bf16.gmra.mxu0 %v3083
        %v3158 = vpop.f32.mrf.mxu0
        %v3159 = vadd.f32 %v3100, %v3158
        %v3160 = vpop.f32.mrf.mxu0
        %3161 = vdwg.mxu0
        %v3162 = vxor.u32 %v3159, 2147483648
        %v3163 = vmul.f32 %v3162, 1.442695
        %v3164 = vpow.pop %v3163
        %v3165 = vadd.f32 %v3164, 1.0
        %v3166 = vrcp.pop %v3165
        %v3167 = vmul.f32 %v3165, %v3166
        %v3168 = vsub.f32 1.0, %v3167
        %v3169 = vmul.f32 %v3166, %v3168
        %v3170 = vadd.f32 %v3166, %v3169
        %vm3171 = vweird.f32 %v3165
        %vm3172 = vweird.f32 %v3166
        %vm3173 = vmor %vm3171, %vm3172
        %v3174 = vsel %vm3173, %v3166, %v3170
        %v3175 = vand.u32 2147483647, %v3165
        %vm3176 = vcmp.eq.f32.partialorder %v3175, 8.507059e+37
        %v3177 = vand.u32 %v3165, 2147483648
        %v3178 = vor.u32 1.1754944e-38, %v3177
        %v3179 = vsel %vm3176, %v3178, %v3174
        %v3180 = vmul.f32 1.0, %v3179
        %3181 = vst [vmem:[%s333] sm:$0xff] %v3180
        %s3182 = sand.u32 %s149, 1
        %s3183 = scalar_lea.sflag [#allocation4], %s3182
        %s3184 = sand.u32 %s149, 1
        %s3185 = smul.addr %s3184, 8
        %s3186 = scalar_lea.vmem [#allocation11], %s3185
        // Predicated region
        $region61: #{tpu_custom_call.1} parent=39 // pred_check
          %p3187 = pneg %p159
        $region62: #{tpu_custom_call.1} parent=39 // pred_check_branch
          %3189 = sbr.rel (%p3187) target = $region64
        $region63: #{tpu_custom_call.1} parent=39 // pred_region
          %3191 = vsyncadd %s3183, 0
          %s3192 = smul.addr %s26, 8
          %s3193 = scalar_lea.hbm %s5, %s3192
          %s3195 = sshll.u32 %s3186, 4
          %s3196 = int_to_ptr.vmem [resolvable:$true] %s3195
          %s3197 = sshll.u32 %s3193, 4
          %s3198 = int_to_ptr.hbm [resolvable:$true] %s3197
          %3200 = dma.vmem_to_hbm [thread:$0]  %s3196, 128, %s3198, %s3183
        $region64: #{tpu_custom_call.1} parent=39 // pred_fallthru
          _
      $region40: #{tpu_custom_call.1} parent=5 // pred_fallthru
        _
      %p3201 = scmp.le.s32.totalorder 2, %s21
      // Predicated region
      $region65: #{tpu_custom_call.1} parent=5 // pred_check
        %p3202 = pneg %p3201
      $region66: #{tpu_custom_call.1} parent=5 // pred_check_branch
        %3204 = sbr.rel (%p3202) target = $region68
      $region67: #{tpu_custom_call.1} parent=5 // pred_region
        %s3205 = ssub.s32 %s21, 2
        // Predicated region
        $region69: #{tpu_custom_call.1} parent=67 // pred_check
          %p3206 = pneg %p165
        $region70: #{tpu_custom_call.1} parent=67 // pred_check_branch
          %3208 = sbr.rel (%p3206) target = $region72
        $region71: #{tpu_custom_call.1} parent=67 // pred_region
          %s3209 = sand.u32 %s150, 1
          %s3210 = scalar_lea.sflag [#allocation4], %s3209
          %s3211 = sand.u32 %s150, 1
          %s3212 = smul.addr %s3211, 8
          %s3213 = scalar_lea.vmem [#allocation11], %s3212
          %3215 = dma.done %s3210, 128
        $region72: #{tpu_custom_call.1} parent=67 // pred_fallthru
          _
      $region68: #{tpu_custom_call.1} parent=5 // pred_fallthru
        _
    $region6: #{tpu_custom_call.1} parent=1 // loop_footer
      %s25 = sadd.s32 1, %s21
    $region7: #{tpu_custom_call.1} parent=1 // loop_footer_branch
      %20 = sbr.rel target = $region3
    $region8: #{tpu_custom_call.1} parent=1 // loop_exit
      _
    %3216 = vsyncpa [#allocation3], 1
    %s3217 = scalar_lea.sflag [#allocation3], 1
    %3218 = vsyncpa %s3217, 1
    %3219 = vsyncpa [#allocation6], 1
    %s3220 = scalar_lea.sflag [#allocation6], 1
    %3221 = vsyncpa %s3220, 1
    %3222 = vsyncpa [#allocation9], 1
    %3223 = vsyncpa [#allocation4], 1
    %s3224 = scalar_lea.sflag [#allocation4], 1
    %3225 = vsyncpa %s3224, 1

</llo_original>
